<compile_context>
chip_gen: v7x
topology: tpu7x:2x2x1
jax: 0.10.0
libtpu: 0.0.40
codegen_flags: <defaults>
</compile_context>

<pallas_src>
import functools

import jax
import jax.numpy as jnp
from jax.experimental import pallas as pl
from jax.experimental.pallas import tpu as pltpu

_LANE = 128


def _round_up(v, m):
    return ((v + m - 1) // m) * m


def _pad2(a, rows, cols, dtype):
    out = jnp.zeros((rows, cols), dtype)
    return out.at[: a.shape[0], : a.shape[1]].set(a.astype(dtype))


def _vmem_capacity_bytes():
    try:
        return int(pltpu.get_tpu_info().vmem_capacity_bytes)
    except Exception:
        return 64 * 1024 * 1024  # conservative (v7x per-TC VMEM)


def _vmem_limit_bytes():
    cap = _vmem_capacity_bytes()
    # ~100 MiB on 128-MiB chips (v5e/v6e), ~50 MiB on 64-MiB chips (v7x).
    return max(16 * 1024 * 1024, min(int(cap * 0.78), 100 * 1024 * 1024))


def _fused_fits(n_pad, fin_pad, h_pad, g_pad, c_pad, vmem_limit):
    f = max(fin_pad, h_pad)
    need = (n_pad * n_pad * 2          # adj (bf16, resident)
            + n_pad * fin_pad * 2      # x
            + g_pad * n_pad * 2        # pooling matrix
            + 8 * n_pad * f * 4        # f32 intermediates (xw, agg, h) with slack
            + 3 * f * f * 2            # weights
            + g_pad * c_pad * 4)       # output
    return need <= int(0.6 * vmem_limit)


def _pick_tm(block_rows, n_pad0, h_pad, vmem_limit):
    """Adj row-block size for the tiled path, sized to the chip's VMEM."""
    resident = 2 * n_pad0 * h_pad * 2                    # resident xW (2 bufs, bf16)
    budget = max(int(0.55 * vmem_limit) - resident, 2 * 128 * n_pad0 * 2)
    tm_max = budget // (2 * n_pad0 * 2)                  # 2 adj buffers, bf16
    tm = 128
    for cand in (2048, 1024, 512, 256, 128):
        if cand <= block_rows and cand <= tm_max:
            tm = cand
            break
    # Keep a few grid steps alive so the adj DMA overlaps compute (v7x: 2 TCs).
    while tm > 128 and n_pad0 // tm < 4:
        tm //= 2
    return tm


# --------------------------------------------------------------------------- #
# Kernels
# --------------------------------------------------------------------------- #
def _fused_ginnet_kernel(adj_ref, x_ref, w1_ref, b1_ref, w2_ref, b2_ref,
                         pool_ref, wfc_ref, bfc_ref, out_ref, *, eps):
    """Whole GINNet forward with everything VMEM-resident (small/medium graphs)."""
    adj = adj_ref[...]                                   # (Np, Np) bf16, reused twice

    # ---- GIN layer 1, reassociated: ReLU(adj @ (xW) + (1+eps)*(xW) + b) ----
    xw = jnp.dot(x_ref[...], w1_ref[...], preferred_element_type=jnp.float32)
    h = jnp.dot(adj, xw.astype(jnp.bfloat16), preferred_element_type=jnp.float32)
    h = jnp.maximum(h + (1.0 + eps) * xw + b1_ref[...], 0.0)
    h1 = h.astype(jnp.bfloat16)
    # NOTE: padded node rows come out as ReLU(b) != 0; harmless because padded
    # columns of adj and pool are zero, so pad rows never feed real outputs.
    # TODO(synk): F.dropout(p=0.25) is the identity at inference (training=False).

    # ---- GIN layer 2 ----
    xw2 = jnp.dot(h1, w2_ref[...], preferred_element_type=jnp.float32)
    h = jnp.dot(adj, xw2.astype(jnp.bfloat16), preferred_element_type=jnp.float32)
    h = jnp.maximum(h + (1.0 + eps) * xw2 + b2_ref[...], 0.0)
    h2 = h.astype(jnp.bfloat16)

    # ---- global_mean_pool + fc ----
    pooled = jnp.dot(pool_ref[...], h2, preferred_element_type=jnp.float32)
    out_ref[...] = (jnp.dot(pooled.astype(jnp.bfloat16), wfc_ref[...],
                            preferred_element_type=jnp.float32) + bfc_ref[...])


def _gin_layer_kernel(adj_ref, xw_ref, b_ref, h_ref, *, eps, tm):
    """Tiled GIN layer (reassociated) for one adj row-block.

    adj_ref: (TM, Np)  bf16  streamed row-block of the dense adjacency
    xw_ref:  (Np, Fo)  bf16  x @ W, VMEM resident
    b_ref:   (1,  Fo)  f32
    h_ref:   (TM, Fo)  bf16  output block
    """
    agg = jnp.dot(adj_ref[...], xw_ref[...], preferred_element_type=jnp.float32)
    row0 = pl.multiple_of(pl.program_id(0) * tm, tm)
    xw_self = xw_ref[pl.ds(row0, tm), :].astype(jnp.float32)
    h = jnp.maximum(agg + (1.0 + eps) * xw_self + b_ref[...], 0.0)
    # NOTE: padded node rows are ReLU(b) != 0 (adj/pool pad columns are zero, so
    # this never contaminates real outputs).
    h_ref[...] = h.astype(h_ref.dtype)


def _pool_fc_kernel(pool_ref, h_ref, wfc_ref, bfc_ref, out_ref, acc_ref):
    """global_mean_pool + final Linear, accumulated over node-row blocks."""
    i = pl.program_id(0)

    @pl.when(i == 0)
    def _init():
        acc_ref[...] = jnp.zeros_like(acc_ref)

    acc_ref[...] += jnp.dot(pool_ref[...], h_ref[...],
                            preferred_element_type=jnp.float32)

    @pl.when(i == pl.num_programs(0) - 1)
    def _finalize():
        out_ref[...] = (
            jnp.dot(acc_ref[...].astype(jnp.bfloat16), wfc_ref[...],
                    preferred_element_type=jnp.float32) + bfc_ref[...])


# --------------------------------------------------------------------------- #
# pallas_call wrappers
# --------------------------------------------------------------------------- #
def _fused_call(adj, x_p, w1p, b1p, w2p, b2p, pool_p, wfcp, bfcp, *, eps,
                vmem_limit):
    n_pad = adj.shape[0]
    fin, h_pad = w1p.shape
    g_pad, c_pad = pool_p.shape[0], wfcp.shape[1]
    flops = (2 * n_pad * fin * h_pad + 2 * 2 * n_pad * n_pad * h_pad
             + 2 * n_pad * h_pad * h_pad + 2 * g_pad * n_pad * h_pad
             + 2 * g_pad * h_pad * c_pad)
    bytes_accessed = (adj.size * 2 + x_p.size * 2 + pool_p.size * 2
                      + (w1p.size + w2p.size + wfcp.size) * 2
                      + (b1p.size + b2p.size + bfcp.size) * 4
                      + g_pad * c_pad * 4)
    return pl.pallas_call(
        functools.partial(_fused_ginnet_kernel, eps=eps),
        out_shape=jax.ShapeDtypeStruct((g_pad, c_pad), jnp.float32),
        compiler_params=pltpu.CompilerParams(vmem_limit_bytes=vmem_limit),
        cost_estimate=pl.CostEstimate(flops=int(flops), transcendentals=0,
                                      bytes_accessed=int(bytes_accessed)),
    )(adj, x_p, w1p, b1p, w2p, b2p, pool_p, wfcp, bfcp)


def _gin_layer_call(adj, xw, b, *, tm, eps, vmem_limit):
    n_pad = adj.shape[0]
    fout = xw.shape[1]
    flops = 2 * n_pad * n_pad * fout + 3 * n_pad * fout
    bytes_accessed = adj.size * 2 + xw.size * 2 + b.size * 4 + n_pad * fout * 2
    return pl.pallas_call(
        functools.partial(_gin_layer_kernel, eps=eps, tm=tm),
        out_shape=jax.ShapeDtypeStruct((n_pad, fout), jnp.bfloat16),
        grid=(n_pad // tm,),
        in_specs=[
            pl.BlockSpec((tm, n_pad), lambda i: (i, 0)),     # adj row-block (streamed)
            pl.BlockSpec((n_pad, fout), lambda i: (0, 0)),   # xW (resident)
            pl.BlockSpec((1, fout), lambda i: (0, 0)),       # bias (resident)
        ],
        out_specs=pl.BlockSpec((tm, fout), lambda i: (i, 0)),
        compiler_params=pltpu.CompilerParams(
            dimension_semantics=("parallel",),
            vmem_limit_bytes=vmem_limit),
        cost_estimate=pl.CostEstimate(flops=int(flops), transcendentals=0,
                                      bytes_accessed=int(bytes_accessed)),
    )(adj, xw, b)


def _pool_fc_call(pool, h2, wfc, bfc, *, tm, vmem_limit):
    g_pad, n_pad = pool.shape
    h_pad = h2.shape[1]
    c_pad = wfc.shape[1]
    flops = 2 * g_pad * n_pad * h_pad + 2 * g_pad * h_pad * c_pad
    bytes_accessed = (pool.size * 2 + h2.size * 2 + wfc.size * 2 + bfc.size * 4
                      + g_pad * c_pad * 4)
    return pl.pallas_call(
        _pool_fc_kernel,
        out_shape=jax.ShapeDtypeStruct((g_pad, c_pad), jnp.float32),
        grid=(n_pad // tm,),
        in_specs=[
            pl.BlockSpec((g_pad, tm), lambda i: (0, i)),     # pooling-matrix columns
            pl.BlockSpec((tm, h_pad), lambda i: (i, 0)),     # h2 row-block
            pl.BlockSpec((h_pad, c_pad), lambda i: (0, 0)),  # W_fc (resident)
            pl.BlockSpec((1, c_pad), lambda i: (0, 0)),      # b_fc (resident)
        ],
        out_specs=pl.BlockSpec((g_pad, c_pad), lambda i: (0, 0)),
        scratch_shapes=[pltpu.VMEM((g_pad, h_pad), jnp.float32)],
        compiler_params=pltpu.CompilerParams(
            dimension_semantics=("arbitrary",),              # reduction over row blocks
            vmem_limit_bytes=vmem_limit),
        cost_estimate=pl.CostEstimate(flops=int(flops), transcendentals=0,
                                      bytes_accessed=int(bytes_accessed)),
    )(pool, h2, wfc, bfc)


# --------------------------------------------------------------------------- #
# Forward pass
# --------------------------------------------------------------------------- #
def ginnet_forward(x, edge_index, batch, num_graphs, params, *,
                   block_rows=512, eps=0.0, force_tiled=False):
    """x: (N, Cin) f32, edge_index: (2, E) int32 [src; dst], batch: (N,) int32."""
    if block_rows % _LANE != 0:
        raise ValueError("block_rows must be a multiple of 128")
    n, cin = x.shape
    hid = params["w1"].shape[1]
    ncls = params["wfc"].shape[1]

    fin_pad = _round_up(cin, _LANE)
    h_pad = _round_up(hid, _LANE)
    c_pad = _round_up(ncls, _LANE)
    g_pad = _round_up(num_graphs, 16)          # bf16 packs 16 rows per sublane group

    vmem_limit = _vmem_limit_bytes()
    n_pad0 = _round_up(max(n, _LANE), _LANE)
    use_fused = (not force_tiled) and _fused_fits(n_pad0, fin_pad, h_pad, g_pad,
                                                  c_pad, vmem_limit)
    if use_fused:
        n_pad = n_pad0
        tm = None
    else:
        tm = _pick_tm(block_rows, n_pad0, h_pad, vmem_limit)
        n_pad = _round_up(max(n_pad0, tm), tm)

    # ---- glue (plain JAX): adjacency, padded features, pooling matrix ----
    # adj[i, j] = #edges j -> i (no self-loop term; (1+eps)*x_i added in-kernel).
    # Built directly in bf16 (counts <= 256 are exact) -> no f32 N^2 intermediate.
    src, dst = edge_index[0], edge_index[1]
    adj = jnp.zeros((n_pad, n_pad), jnp.bfloat16).at[dst, src].add(1.0)

    x_p = _pad2(x, n_pad, fin_pad, jnp.bfloat16)

    counts = jnp.zeros((num_graphs,), jnp.float32).at[batch].add(1.0)
    onehot = (jnp.arange(num_graphs)[:, None] == batch[None, :]).astype(jnp.float32)
    pool = onehot / jnp.maximum(counts, 1.0)[:, None]            # (G, N)
    pool_p = _pad2(pool, g_pad, n_pad, jnp.bfloat16)

    w1p = _pad2(params["w1"], fin_pad, h_pad, jnp.bfloat16)
    b1p = _pad2(params["b1"], 1, h_pad, jnp.float32)
    w2p = _pad2(params["w2"], h_pad, h_pad, jnp.bfloat16)
    b2p = _pad2(params["b2"], 1, h_pad, jnp.float32)
    wfcp = _pad2(params["wfc"], h_pad, c_pad, jnp.bfloat16)
    bfcp = _pad2(params["bfc"], 1, c_pad, jnp.float32)

    if use_fused:
        out_p = _fused_call(adj, x_p, w1p, b1p, w2p, b2p, pool_p, wfcp, bfcp,
                            eps=eps, vmem_limit=vmem_limit)
    else:
        # Reassociated GIN: precompute xW as a tiny resident operand per layer.
        xw1 = jnp.dot(x_p, w1p, preferred_element_type=jnp.float32).astype(jnp.bfloat16)
        h1 = _gin_layer_call(adj, xw1, b1p, tm=tm, eps=eps, vmem_limit=vmem_limit)
        xw2 = jnp.dot(h1, w2p, preferred_element_type=jnp.float32).astype(jnp.bfloat16)
        h2 = _gin_layer_call(adj, xw2, b2p, tm=tm, eps=eps, vmem_limit=vmem_limit)
        out_p = _pool_fc_call(pool_p, h2, wfcp, bfcp, tm=tm, vmem_limit=vmem_limit)

    return out_p[:num_graphs, :ncls]


# --------------------------------------------------------------------------- #
# Reference / init / demo
# --------------------------------------------------------------------------- #
def _reference_forward(x, edge_index, batch, num_graphs, params, eps=0.0):
    n = x.shape[0]
    src, dst = edge_index[0], edge_index[1]
    adj = jnp.zeros((n, n), jnp.float32).at[dst, src].add(1.0)

    def gin(h, w, b):
        return jax.nn.relu((adj @ h + (1.0 + eps) * h) @ w + b)

    h1 = gin(x, params["w1"], params["b1"])
    h2 = gin(h1, params["w2"], params["b2"])
    counts = jnp.zeros((num_graphs,), jnp.float32).at[batch].add(1.0)
    onehot = (jnp.arange(num_graphs)[:, None] == batch[None, :]).astype(jnp.float32)
    pool = onehot / jnp.maximum(counts, 1.0)[:, None]
    return (pool @ h2) @ params["wfc"] + params["bfc"]


def init_params(key, in_channels, hidden_channels, num_classes):
    """Deterministic Linear-style init. Weights stored as (in, out); biases (1, out)."""
    ks = jax.random.split(key, 6)

    def linear(kw, kb, fan_in, fan_out):
        bound = 1.0 / jnp.sqrt(fan_in)
        w = jax.random.uniform(kw, (fan_in, fan_out), jnp.float32, -bound, bound)
        b = jax.random.uniform(kb, (1, fan_out), jnp.float32, -bound, bound)
        return w, b

    w1, b1 = linear(ks[0], ks[1], in_channels, hidden_channels)
    w2, b2 = linear(ks[2], ks[3], hidden_channels, hidden_channels)
    wfc, bfc = linear(ks[4], ks[5], hidden_channels, num_classes)
    return dict(w1=w1, b1=b1, w2=w2, b2=b2, wfc=wfc, bfc=bfc)


if __name__ == "__main__":
    IN_CHANNELS, HIDDEN, NUM_CLASSES = 8, 32, 4
    N_NODES, N_EDGES, N_GRAPHS = 200, 600, 3

    key = jax.random.PRNGKey(0)
    k_x, k_e, k_p = jax.random.split(key, 3)

    x = jax.random.normal(k_x, (N_NODES, IN_CHANNELS), jnp.float32)
    edge_index = jax.random.randint(k_e, (2, N_EDGES), 0, N_NODES, jnp.int32)
    # contiguous graph assignment: ~N/3 nodes per graph
    batch = ((jnp.arange(N_NODES) * N_GRAPHS) // N_NODES).astype(jnp.int32)

    params = init_params(k_p, IN_CHANNELS, HIDDEN, NUM_CLASSES)
    ref = _reference_forward(x, edge_index, batch, N_GRAPHS, params)

    # Path 1: fused single-kernel path (auto-selected for small graphs).
    out = ginnet_forward(x, edge_index, batch, N_GRAPHS, params)
    jax.block_until_ready(out)
    assert out.shape == (N_GRAPHS, NUM_CLASSES)
    assert bool(jnp.all(jnp.isfinite(out)))
    assert bool(jnp.allclose(out, ref, rtol=1e-1, atol=1e-1)), (out, ref)

    # Path 2: tiled/streaming path (forced; block_rows=128 -> n_pad=256 -> 2-step
    # grid, exercising the pipelined adj stream + pool/FC accumulator).
    out_t = ginnet_forward(x, edge_index, batch, N_GRAPHS, params,
                           block_rows=128, force_tiled=True)
    jax.block_until_ready(out_t)
    assert out_t.shape == (N_GRAPHS, NUM_CLASSES)
    assert bool(jnp.allclose(out_t, ref, rtol=1e-1, atol=1e-1)), (out_t, ref)

    print("KERNEL_OK")
</pallas_src>

<mosaic_0001>
module attributes {stable_mosaic.version = 11 : i64} {
  func.func @_fused_ginnet_kernel(%arg0: memref<256x256xbf16, #tpu.memory_space<vmem>>, %arg1: memref<256x128xbf16, #tpu.memory_space<vmem>>, %arg2: memref<128x128xbf16, #tpu.memory_space<vmem>>, %arg3: memref<1x128xf32, #tpu.memory_space<vmem>>, %arg4: memref<128x128xbf16, #tpu.memory_space<vmem>>, %arg5: memref<1x128xf32, #tpu.memory_space<vmem>>, %arg6: memref<16x256xbf16, #tpu.memory_space<vmem>>, %arg7: memref<128x128xbf16, #tpu.memory_space<vmem>>, %arg8: memref<1x128xf32, #tpu.memory_space<vmem>>, %arg9: memref<16x128xf32, #tpu.memory_space<vmem>>) attributes {dimension_semantics = [], scalar_prefetch = 0 : i64, scratch_operands = 0 : i64, tpu.core_type = #tpu.core_type<tc>} {
    %c0 = arith.constant 0 : index
    %c0_0 = arith.constant 0 : index
    %0 = vector.load %arg0[%c0, %c0_0] : memref<256x256xbf16, #tpu.memory_space<vmem>>, vector<256x256xbf16>
    %c0_1 = arith.constant 0 : index
    %c0_2 = arith.constant 0 : index
    %1 = vector.load %arg1[%c0_1, %c0_2] : memref<256x128xbf16, #tpu.memory_space<vmem>>, vector<256x128xbf16>
    %c0_3 = arith.constant 0 : index
    %c0_4 = arith.constant 0 : index
    %2 = vector.load %arg2[%c0_3, %c0_4] : memref<128x128xbf16, #tpu.memory_space<vmem>>, vector<128x128xbf16>
    %cst = arith.constant dense<0.000000e+00> : vector<256x128xf32>
    %3 = tpu.matmul %1, %2, %cst {dimension_numbers = #tpu.dot_dimension_numbers<[1], [0], [0], [1], [0, 0, 1, 1], [], []>} : vector<256x128xbf16>, vector<128x128xbf16>, vector<256x128xf32> -> vector<256x128xf32>
    %4 = arith.truncf %3 : vector<256x128xf32> to vector<256x128xbf16>
    %cst_5 = arith.constant dense<0.000000e+00> : vector<256x128xf32>
    %5 = tpu.matmul %0, %4, %cst_5 {dimension_numbers = #tpu.dot_dimension_numbers<[1], [0], [0], [1], [0, 0, 1, 1], [], []>} : vector<256x256xbf16>, vector<256x128xbf16>, vector<256x128xf32> -> vector<256x128xf32>
    %cst_6 = arith.constant 1.000000e+00 : f32
    %6 = vector.broadcast %cst_6 : f32 to vector<256x128xf32>
    %7 = arith.mulf %6, %3 : vector<256x128xf32>
    %8 = arith.addf %5, %7 : vector<256x128xf32>
    %c0_7 = arith.constant 0 : index
    %c0_8 = arith.constant 0 : index
    %9 = vector.load %arg3[%c0_7, %c0_8] : memref<1x128xf32, #tpu.memory_space<vmem>>, vector<1x128xf32>
    %10 = vector.broadcast %9 : vector<1x128xf32> to vector<256x128xf32>
    %11 = arith.addf %8, %10 : vector<256x128xf32>
    %cst_9 = arith.constant 0.000000e+00 : f32
    %12 = vector.broadcast %cst_9 : f32 to vector<256x128xf32>
    %13 = arith.maximumf %11, %12 : vector<256x128xf32>
    %14 = arith.truncf %13 : vector<256x128xf32> to vector<256x128xbf16>
    %c0_10 = arith.constant 0 : index
    %c0_11 = arith.constant 0 : index
    %15 = vector.load %arg4[%c0_10, %c0_11] : memref<128x128xbf16, #tpu.memory_space<vmem>>, vector<128x128xbf16>
    %cst_12 = arith.constant dense<0.000000e+00> : vector<256x128xf32>
    %16 = tpu.matmul %14, %15, %cst_12 {dimension_numbers = #tpu.dot_dimension_numbers<[1], [0], [0], [1], [0, 0, 1, 1], [], []>} : vector<256x128xbf16>, vector<128x128xbf16>, vector<256x128xf32> -> vector<256x128xf32>
    %17 = arith.truncf %16 : vector<256x128xf32> to vector<256x128xbf16>
    %cst_13 = arith.constant dense<0.000000e+00> : vector<256x128xf32>
    %18 = tpu.matmul %0, %17, %cst_13 {dimension_numbers = #tpu.dot_dimension_numbers<[1], [0], [0], [1], [0, 0, 1, 1], [], []>} : vector<256x256xbf16>, vector<256x128xbf16>, vector<256x128xf32> -> vector<256x128xf32>
    %cst_14 = arith.constant 1.000000e+00 : f32
    %19 = vector.broadcast %cst_14 : f32 to vector<256x128xf32>
    %20 = arith.mulf %19, %16 : vector<256x128xf32>
    %21 = arith.addf %18, %20 : vector<256x128xf32>
    %c0_15 = arith.constant 0 : index
    %c0_16 = arith.constant 0 : index
    %22 = vector.load %arg5[%c0_15, %c0_16] : memref<1x128xf32, #tpu.memory_space<vmem>>, vector<1x128xf32>
    %23 = vector.broadcast %22 : vector<1x128xf32> to vector<256x128xf32>
    %24 = arith.addf %21, %23 : vector<256x128xf32>
    %cst_17 = arith.constant 0.000000e+00 : f32
    %25 = vector.broadcast %cst_17 : f32 to vector<256x128xf32>
    %26 = arith.maximumf %24, %25 : vector<256x128xf32>
    %27 = arith.truncf %26 : vector<256x128xf32> to vector<256x128xbf16>
    %c0_18 = arith.constant 0 : index
    %c0_19 = arith.constant 0 : index
    %28 = vector.load %arg6[%c0_18, %c0_19] : memref<16x256xbf16, #tpu.memory_space<vmem>>, vector<16x256xbf16>
    %cst_20 = arith.constant dense<0.000000e+00> : vector<16x128xf32>
    %29 = tpu.matmul %28, %27, %cst_20 {dimension_numbers = #tpu.dot_dimension_numbers<[1], [0], [0], [1], [0, 0, 1, 1], [], []>} : vector<16x256xbf16>, vector<256x128xbf16>, vector<16x128xf32> -> vector<16x128xf32>
    %30 = arith.truncf %29 : vector<16x128xf32> to vector<16x128xbf16>
    %c0_21 = arith.constant 0 : index
    %c0_22 = arith.constant 0 : index
    %31 = vector.load %arg7[%c0_21, %c0_22] : memref<128x128xbf16, #tpu.memory_space<vmem>>, vector<128x128xbf16>
    %cst_23 = arith.constant dense<0.000000e+00> : vector<16x128xf32>
    %32 = tpu.matmul %30, %31, %cst_23 {dimension_numbers = #tpu.dot_dimension_numbers<[1], [0], [0], [1], [0, 0, 1, 1], [], []>} : vector<16x128xbf16>, vector<128x128xbf16>, vector<16x128xf32> -> vector<16x128xf32>
    %c0_24 = arith.constant 0 : index
    %c0_25 = arith.constant 0 : index
    %33 = vector.load %arg8[%c0_24, %c0_25] : memref<1x128xf32, #tpu.memory_space<vmem>>, vector<1x128xf32>
    %34 = vector.broadcast %33 : vector<1x128xf32> to vector<16x128xf32>
    %35 = arith.addf %32, %34 : vector<16x128xf32>
    %c0_26 = arith.constant 0 : index
    %c0_27 = arith.constant 0 : index
    %36 = vector.load %arg9[%c0_26, %c0_27] : memref<16x128xf32, #tpu.memory_space<vmem>>, vector<16x128xf32>
    tpu.vector_store %arg9[%c0_26, %c0_27], %35 {strides = array<i32>} : memref<16x128xf32, #tpu.memory_space<vmem>>, vector<16x128xf32>,
    return
  }
}

</mosaic_0001>

<llo_original>
// kernel: tpu_custom_call.1
$region0: #{tpu_custom_call.1}
  #allocation0 [shape = 'u32[]', space=smem, size = 0x4, offset = 0x4, fixed_abs, tag = 'smem constant byte address 0x4 - core index']
  #allocation1 [shape = 'u32[144,128]{1,0:T(1,128)}', space=vmem, size = 0x12000, scoped, tag = 'internal scratch']
  %s0 = inlined_call_operand.hbm [shape: bf16[256,256], index: 0, kind: input, shape index: {}]
  %s1 = inlined_call_operand.hbm [shape: bf16[256,128], index: 1, kind: input, shape index: {}]
  %s2 = inlined_call_operand.hbm [shape: bf16[128,128], index: 2, kind: input, shape index: {}]
  %s3 = inlined_call_operand.vmem [shape: f32[1,128], index: 3, kind: input, shape index: {}]
  %s4 = inlined_call_operand.hbm [shape: bf16[128,128], index: 4, kind: input, shape index: {}]
  %s5 = inlined_call_operand.vmem [shape: f32[1,128], index: 5, kind: input, shape index: {}]
  %s6 = inlined_call_operand.vmem [shape: bf16[16,256], index: 6, kind: input, shape index: {}]
  %s7 = inlined_call_operand.hbm [shape: bf16[128,128], index: 7, kind: input, shape index: {}]
  %s8 = inlined_call_operand.vmem [shape: f32[1,128], index: 8, kind: input, shape index: {}]
  %s9 = inlined_call_operand.hbm [shape: f32[16,128], index: 9, kind: output, shape index: {}]
  %s10 = sld [smem:[#allocation0]]
  $region66: #{tpu_custom_call.1} parent=0
    _
  %s12 = ssub.s32 1, %s10
  %s13 = scalar_select 0, %s12, %s10
  $region1: #{tpu_custom_call.1} parent=0
    #allocation2 [shape = 'u8[131072]{0}', space=vmem, size = 0x20000, scoped, tag = 'input window, operand 0, single buffered']
    #allocation3 [shape = 's32[1]{0}', space=sflag, size = 0x4, scoped, tag = 'scoped memory for tpu_custom_call.1']
    #allocation4 [shape = 's32[1]{0}', space=sflag, size = 0x4, scoped, tag = 'scoped memory for tpu_custom_call.1']
    #allocation5 [shape = 'u8[65536]{0}', space=vmem, size = 0x10000, scoped, tag = 'input window, operand 1, single buffered']
    #allocation6 [shape = 's32[1]{0}', space=sflag, size = 0x4, scoped, tag = 'scoped memory for tpu_custom_call.1']
    #allocation7 [shape = 'u8[32768]{0}', space=vmem, size = 0x8000, scoped, tag = 'input window, operand 2, single buffered']
    #allocation8 [shape = 'u8[32768]{0}', space=vmem, size = 0x8000, scoped, tag = 'input window, operand 4, single buffered']
    #allocation9 [shape = 's32[1]{0}', space=sflag, size = 0x4, scoped, tag = 'scoped memory for tpu_custom_call.1']
    #allocation10 [shape = 'u8[32768]{0}', space=vmem, size = 0x8000, scoped, tag = 'input window, operand 7, single buffered']
    #allocation11 [shape = 'u8[8192]{0}', space=vmem, size = 0x2000, scoped, tag = 'output window, operand 0, single buffered']
    %14 = vsyncpa [#allocation3], 0
    %15 = vsyncpa [#allocation6], 0
    %16 = vsyncpa [#allocation9], 0
    %17 = vsyncpa [#allocation4], 0
    // Predicated region
    $region2: #{tpu_custom_call.1} parent=1 // pred_check
      _
    $region3: #{tpu_custom_call.1} parent=1 // pred_check_branch
      %19 = sbr.rel (0) target = $region5
    $region4: #{tpu_custom_call.1} parent=1 // pred_region
      %s21 = ssub.s32 4096, 4096
      %22 = vsyncadd [#allocation3], %s21
      %s23 = sshll.u32 [#allocation2], 4
      %s24 = int_to_ptr.vmem [resolvable:$true] %s23
      %29 = dma.hbm_to_vmem [thread:$0]  %s0, 4096, %s24, [#allocation3], 128, 128, 8
    $region5: #{tpu_custom_call.1} parent=1 // pred_fallthru
      _
    // Predicated region
    $region6: #{tpu_custom_call.1} parent=1 // pred_check
      _
    $region7: #{tpu_custom_call.1} parent=1 // pred_check_branch
      %31 = sbr.rel (0) target = $region9
    $region8: #{tpu_custom_call.1} parent=1 // pred_region
      %s33 = ssub.s32 2048, 2048
      %34 = vsyncadd [#allocation6], %s33
      %s35 = sshll.u32 [#allocation5], 4
      %s36 = int_to_ptr.vmem [resolvable:$true] %s35
      %41 = dma.hbm_to_vmem [thread:$0]  %s1, 2048, %s36, [#allocation6], 64, 64, 4
    $region9: #{tpu_custom_call.1} parent=1 // pred_fallthru
      _
    // Predicated region
    $region10: #{tpu_custom_call.1} parent=1 // pred_check
      _
    $region11: #{tpu_custom_call.1} parent=1 // pred_check_branch
      %43 = sbr.rel (0) target = $region13
    $region12: #{tpu_custom_call.1} parent=1 // pred_region
      %s45 = ssub.s32 1024, 1024
      %46 = vsyncadd [#allocation6], %s45
      %s47 = sshll.u32 [#allocation7], 4
      %s48 = int_to_ptr.vmem [resolvable:$true] %s47
      %53 = dma.hbm_to_vmem [thread:$0]  %s2, 1024, %s48, [#allocation6], 64, 64, 4
    $region13: #{tpu_custom_call.1} parent=1 // pred_fallthru
      _
    // Predicated region
    $region14: #{tpu_custom_call.1} parent=1 // pred_check
      _
    $region15: #{tpu_custom_call.1} parent=1 // pred_check_branch
      %55 = sbr.rel (0) target = $region17
    $region16: #{tpu_custom_call.1} parent=1 // pred_region
      _
    $region17: #{tpu_custom_call.1} parent=1 // pred_fallthru
      _
    // Predicated region
    $region18: #{tpu_custom_call.1} parent=1 // pred_check
      _
    $region19: #{tpu_custom_call.1} parent=1 // pred_check_branch
      %57 = sbr.rel (0) target = $region21
    $region20: #{tpu_custom_call.1} parent=1 // pred_region
      %s59 = ssub.s32 1024, 1024
      %60 = vsyncadd [#allocation9], %s59
      %s61 = sshll.u32 [#allocation8], 4
      %s62 = int_to_ptr.vmem [resolvable:$true] %s61
      %67 = dma.hbm_to_vmem [thread:$0]  %s4, 1024, %s62, [#allocation9], 64, 64, 4
    $region21: #{tpu_custom_call.1} parent=1 // pred_fallthru
      _
    // Predicated region
    $region22: #{tpu_custom_call.1} parent=1 // pred_check
      _
    $region23: #{tpu_custom_call.1} parent=1 // pred_check_branch
      %69 = sbr.rel (0) target = $region25
    $region24: #{tpu_custom_call.1} parent=1 // pred_region
      _
    $region25: #{tpu_custom_call.1} parent=1 // pred_fallthru
      _
    // Predicated region
    $region26: #{tpu_custom_call.1} parent=1 // pred_check
      _
    $region27: #{tpu_custom_call.1} parent=1 // pred_check_branch
      %71 = sbr.rel (0) target = $region29
    $region28: #{tpu_custom_call.1} parent=1 // pred_region
      _
    $region29: #{tpu_custom_call.1} parent=1 // pred_fallthru
      _
    // Predicated region
    $region30: #{tpu_custom_call.1} parent=1 // pred_check
      _
    $region31: #{tpu_custom_call.1} parent=1 // pred_check_branch
      %73 = sbr.rel (0) target = $region33
    $region32: #{tpu_custom_call.1} parent=1 // pred_region
      %s75 = ssub.s32 1024, 1024
      %76 = vsyncadd [#allocation9], %s75
      %s77 = sshll.u32 [#allocation10], 4
      %s78 = int_to_ptr.vmem [resolvable:$true] %s77
      %83 = dma.hbm_to_vmem [thread:$0]  %s7, 1024, %s78, [#allocation9], 64, 64, 4
    $region33: #{tpu_custom_call.1} parent=1 // pred_fallthru
      _
    // Predicated region
    $region34: #{tpu_custom_call.1} parent=1 // pred_check
      _
    $region35: #{tpu_custom_call.1} parent=1 // pred_check_branch
      %85 = sbr.rel (0) target = $region37
    $region36: #{tpu_custom_call.1} parent=1 // pred_region
      _
    $region37: #{tpu_custom_call.1} parent=1 // pred_fallthru
      _
    // Predicated region
    $region38: #{tpu_custom_call.1} parent=1 // pred_check
      _
    $region39: #{tpu_custom_call.1} parent=1 // pred_check_branch
      %87 = sbr.rel (0) target = $region41
    $region40: #{tpu_custom_call.1} parent=1 // pred_region
      %88 = dma.done [#allocation3], 4096
    $region41: #{tpu_custom_call.1} parent=1 // pred_fallthru
      _
    // Predicated region
    $region42: #{tpu_custom_call.1} parent=1 // pred_check
      _
    $region43: #{tpu_custom_call.1} parent=1 // pred_check_branch
      %90 = sbr.rel (0) target = $region45
    $region44: #{tpu_custom_call.1} parent=1 // pred_region
      %91 = dma.done [#allocation6], 2048
    $region45: #{tpu_custom_call.1} parent=1 // pred_fallthru
      _
    // Predicated region
    $region46: #{tpu_custom_call.1} parent=1 // pred_check
      _
    $region47: #{tpu_custom_call.1} parent=1 // pred_check_branch
      %93 = sbr.rel (0) target = $region49
    $region48: #{tpu_custom_call.1} parent=1 // pred_region
      %94 = dma.done [#allocation6], 1024
    $region49: #{tpu_custom_call.1} parent=1 // pred_fallthru
      _
    // Predicated region
    $region50: #{tpu_custom_call.1} parent=1 // pred_check
      _
    $region51: #{tpu_custom_call.1} parent=1 // pred_check_branch
      %96 = sbr.rel (0) target = $region53
    $region52: #{tpu_custom_call.1} parent=1 // pred_region
      %97 = dma.done [#allocation9], 1024
    $region53: #{tpu_custom_call.1} parent=1 // pred_fallthru
      _
    // Predicated region
    $region54: #{tpu_custom_call.1} parent=1 // pred_check
      _
    $region55: #{tpu_custom_call.1} parent=1 // pred_check_branch
      %99 = sbr.rel (0) target = $region57
    $region56: #{tpu_custom_call.1} parent=1 // pred_region
      %100 = dma.done [#allocation9], 1024
    $region57: #{tpu_custom_call.1} parent=1 // pred_fallthru
      _
    %v102 = vld [vmem:[#allocation2] sm:$0xff]
    %v103 = vld [vmem:[#allocation2 + $0x8] sm:$0xff]
    %v104 = vld [vmem:[#allocation2 + $0x10] sm:$0xff]
    %v105 = vld [vmem:[#allocation2 + $0x18] sm:$0xff]
    %v106 = vld [vmem:[#allocation2 + $0x20] sm:$0xff]
    %v107 = vld [vmem:[#allocation2 + $0x28] sm:$0xff]
    %v108 = vld [vmem:[#allocation2 + $0x30] sm:$0xff]
    %v109 = vld [vmem:[#allocation2 + $0x38] sm:$0xff]
    %v110 = vld [vmem:[#allocation2 + $0x40] sm:$0xff]
    %v111 = vld [vmem:[#allocation2 + $0x48] sm:$0xff]
    %v112 = vld [vmem:[#allocation2 + $0x50] sm:$0xff]
    %v113 = vld [vmem:[#allocation2 + $0x58] sm:$0xff]
    %v114 = vld [vmem:[#allocation2 + $0x60] sm:$0xff]
    %v115 = vld [vmem:[#allocation2 + $0x68] sm:$0xff]
    %v116 = vld [vmem:[#allocation2 + $0x70] sm:$0xff]
    %v117 = vld [vmem:[#allocation2 + $0x78] sm:$0xff]
    %v118 = vld [vmem:[#allocation2 + $0x80] sm:$0xff]
    %v119 = vld [vmem:[#allocation2 + $0x88] sm:$0xff]
    %v120 = vld [vmem:[#allocation2 + $0x90] sm:$0xff]
    %v121 = vld [vmem:[#allocation2 + $0x98] sm:$0xff]
    %v122 = vld [vmem:[#allocation2 + $0xa0] sm:$0xff]
    %v123 = vld [vmem:[#allocation2 + $0xa8] sm:$0xff]
    %v124 = vld [vmem:[#allocation2 + $0xb0] sm:$0xff]
    %v125 = vld [vmem:[#allocation2 + $0xb8] sm:$0xff]
    %v126 = vld [vmem:[#allocation2 + $0xc0] sm:$0xff]
    %v127 = vld [vmem:[#allocation2 + $0xc8] sm:$0xff]
    %v128 = vld [vmem:[#allocation2 + $0xd0] sm:$0xff]
    %v129 = vld [vmem:[#allocation2 + $0xd8] sm:$0xff]
    %v130 = vld [vmem:[#allocation2 + $0xe0] sm:$0xff]
    %v131 = vld [vmem:[#allocation2 + $0xe8] sm:$0xff]
    %v132 = vld [vmem:[#allocation2 + $0xf0] sm:$0xff]
    %v133 = vld [vmem:[#allocation2 + $0xf8] sm:$0xff]
    %v134 = vld [vmem:[#allocation5] sm:$0xf]
    %v135 = vld [vmem:[#allocation5 + $0x4] sm:$0xf]
    %v136 = vld [vmem:[#allocation5 + $0x8] sm:$0xf]
    %v137 = vld [vmem:[#allocation5 + $0xc] sm:$0xf]
    %v138 = vld [vmem:[#allocation5 + $0x10] sm:$0xf]
    %v139 = vld [vmem:[#allocation5 + $0x14] sm:$0xf]
    %v140 = vld [vmem:[#allocation5 + $0x18] sm:$0xf]
    %v141 = vld [vmem:[#allocation5 + $0x1c] sm:$0xf]
    %v142 = vld [vmem:[#allocation5 + $0x20] sm:$0xf]
    %v143 = vld [vmem:[#allocation5 + $0x24] sm:$0xf]
    %v144 = vld [vmem:[#allocation5 + $0x28] sm:$0xf]
    %v145 = vld [vmem:[#allocation5 + $0x2c] sm:$0xf]
    %v146 = vld [vmem:[#allocation5 + $0x30] sm:$0xf]
    %v147 = vld [vmem:[#allocation5 + $0x34] sm:$0xf]
    %v148 = vld [vmem:[#allocation5 + $0x38] sm:$0xf]
    %v149 = vld [vmem:[#allocation5 + $0x3c] sm:$0xf]
    %v150 = vld [vmem:[#allocation5 + $0x40] sm:$0xf]
    %v151 = vld [vmem:[#allocation5 + $0x44] sm:$0xf]
    %v152 = vld [vmem:[#allocation5 + $0x48] sm:$0xf]
    %v153 = vld [vmem:[#allocation5 + $0x4c] sm:$0xf]
    %v154 = vld [vmem:[#allocation5 + $0x50] sm:$0xf]
    %v155 = vld [vmem:[#allocation5 + $0x54] sm:$0xf]
    %v156 = vld [vmem:[#allocation5 + $0x58] sm:$0xf]
    %v157 = vld [vmem:[#allocation5 + $0x5c] sm:$0xf]
    %v158 = vld [vmem:[#allocation5 + $0x60] sm:$0xf]
    %v159 = vld [vmem:[#allocation5 + $0x64] sm:$0xf]
    %v160 = vld [vmem:[#allocation5 + $0x68] sm:$0xf]
    %v161 = vld [vmem:[#allocation5 + $0x6c] sm:$0xf]
    %v162 = vld [vmem:[#allocation5 + $0x70] sm:$0xf]
    %v163 = vld [vmem:[#allocation5 + $0x74] sm:$0xf]
    %v164 = vld [vmem:[#allocation5 + $0x78] sm:$0xf]
    %v165 = vld [vmem:[#allocation5 + $0x7c] sm:$0xf]
    %v166 = vld [vmem:[#allocation7] sm:$0xf]
    %v167 = vld [vmem:[#allocation7 + $0x4] sm:$0xf]
    %v168 = vld [vmem:[#allocation7 + $0x8] sm:$0xf]
    %v169 = vld [vmem:[#allocation7 + $0xc] sm:$0xf]
    %v170 = vld [vmem:[#allocation7 + $0x10] sm:$0xf]
    %v171 = vld [vmem:[#allocation7 + $0x14] sm:$0xf]
    %v172 = vld [vmem:[#allocation7 + $0x18] sm:$0xf]
    %v173 = vld [vmem:[#allocation7 + $0x1c] sm:$0xf]
    %v174 = vld [vmem:[#allocation7 + $0x20] sm:$0xf]
    %v175 = vld [vmem:[#allocation7 + $0x24] sm:$0xf]
    %v176 = vld [vmem:[#allocation7 + $0x28] sm:$0xf]
    %v177 = vld [vmem:[#allocation7 + $0x2c] sm:$0xf]
    %v178 = vld [vmem:[#allocation7 + $0x30] sm:$0xf]
    %v179 = vld [vmem:[#allocation7 + $0x34] sm:$0xf]
    %v180 = vld [vmem:[#allocation7 + $0x38] sm:$0xf]
    %v181 = vld [vmem:[#allocation7 + $0x3c] sm:$0xf]
    %v214 = vunpack.c.l.b16 %v134
    %v215 = vunpack.c.l.b16 %v135
    %v216 = vunpack.c.l.b16 %v136
    %v217 = vunpack.c.l.b16 %v137
    %v218 = vunpack.c.l.b16 %v138
    %v219 = vunpack.c.l.b16 %v139
    %v220 = vunpack.c.l.b16 %v140
    %v221 = vunpack.c.l.b16 %v141
    %v222 = vunpack.c.l.b16 %v142
    %v223 = vunpack.c.l.b16 %v143
    %v224 = vunpack.c.l.b16 %v144
    %v225 = vunpack.c.l.b16 %v145
    %v226 = vunpack.c.l.b16 %v146
    %v227 = vunpack.c.l.b16 %v147
    %v228 = vunpack.c.l.b16 %v148
    %v229 = vunpack.c.l.b16 %v149
    %v230 = vunpack.c.l.b16 %v150
    %v231 = vunpack.c.l.b16 %v151
    %v232 = vunpack.c.l.b16 %v152
    %v233 = vunpack.c.l.b16 %v153
    %v234 = vunpack.c.l.b16 %v154
    %v235 = vunpack.c.l.b16 %v155
    %v236 = vunpack.c.l.b16 %v156
    %v237 = vunpack.c.l.b16 %v157
    %v238 = vunpack.c.l.b16 %v158
    %v239 = vunpack.c.l.b16 %v159
    %v240 = vunpack.c.l.b16 %v160
    %v241 = vunpack.c.l.b16 %v161
    %v242 = vunpack.c.l.b16 %v162
    %v243 = vunpack.c.l.b16 %v163
    %v244 = vunpack.c.l.b16 %v164
    %v245 = vunpack.c.l.b16 %v165
    %v246 = vpack.c.b16 %v215, %v214
    %v247 = vpack.c.b16 %v217, %v216
    %v248 = vpack.c.b16 %v219, %v218
    %v249 = vpack.c.b16 %v221, %v220
    %v250 = vpack.c.b16 %v223, %v222
    %v251 = vpack.c.b16 %v225, %v224
    %v252 = vpack.c.b16 %v227, %v226
    %v253 = vpack.c.b16 %v229, %v228
    %v254 = vpack.c.b16 %v231, %v230
    %v255 = vpack.c.b16 %v233, %v232
    %v256 = vpack.c.b16 %v235, %v234
    %v257 = vpack.c.b16 %v237, %v236
    %v258 = vpack.c.b16 %v239, %v238
    %v259 = vpack.c.b16 %v241, %v240
    %v260 = vpack.c.b16 %v243, %v242
    %v261 = vpack.c.b16 %v245, %v244
    %v294 = vunpack.c.l.b16 %v166
    %v295 = vunpack.c.l.b16 %v167
    %v296 = vunpack.c.l.b16 %v168
    %v297 = vunpack.c.l.b16 %v169
    %v298 = vunpack.c.l.b16 %v170
    %v299 = vunpack.c.l.b16 %v171
    %v300 = vunpack.c.l.b16 %v172
    %v301 = vunpack.c.l.b16 %v173
    %v302 = vunpack.c.l.b16 %v174
    %v303 = vunpack.c.l.b16 %v175
    %v304 = vunpack.c.l.b16 %v176
    %v305 = vunpack.c.l.b16 %v177
    %v306 = vunpack.c.l.b16 %v178
    %v307 = vunpack.c.l.b16 %v179
    %v308 = vunpack.c.l.b16 %v180
    %v309 = vunpack.c.l.b16 %v181
    %v310 = vpack.c.b16 %v295, %v294
    %v311 = vpack.c.b16 %v297, %v296
    %v312 = vpack.c.b16 %v299, %v298
    %v313 = vpack.c.b16 %v301, %v300
    %v314 = vpack.c.b16 %v303, %v302
    %v315 = vpack.c.b16 %v305, %v304
    %v316 = vpack.c.b16 %v307, %v306
    %v317 = vpack.c.b16 %v309, %v308
    %326 = vmatprep.subr.bf16.mxu0 0
    %327 = vmatpush1.bf16.msra.mxu0 %v310
    %328 = vmatprep.subr.bf16.mxu0 0
    %329 = vmatpush1.bf16.msra.mxu0 %v311
    %330 = vmatprep.subr.bf16.mxu0 0
    %331 = vmatpush1.bf16.msra.mxu0 %v312
    %332 = vmatprep.subr.bf16.mxu0 0
    %333 = vmatpush1.bf16.msra.mxu0 %v313
    %334 = vmatprep.subr.bf16.mxu0 0
    %335 = vmatpush1.bf16.msra.mxu0 %v314
    %336 = vmatprep.subr.bf16.mxu0 0
    %337 = vmatpush1.bf16.msra.mxu0 %v315
    %338 = vmatprep.subr.bf16.mxu0 0
    %339 = vmatpush1.bf16.msra.mxu0 %v316
    %340 = vmatprep.subr.bf16.mxu0 0
    %341 = vmatpush1.bf16.msra.mxu0 %v317
    %342 = vmatprep.subr.bf16.mxu0 0
    %343 = vmatpush1.bf16.msra.mxu0 0
    %344 = vmatprep.subr.bf16.mxu0 0
    %345 = vmatpush1.bf16.msra.mxu0 0
    %346 = vmatprep.subr.bf16.mxu0 0
    %347 = vmatpush1.bf16.msra.mxu0 0
    %348 = vmatprep.subr.bf16.mxu0 0
    %349 = vmatpush1.bf16.msra.mxu0 0
    %350 = vmatprep.subr.bf16.mxu0 0
    %351 = vmatpush1.bf16.msra.mxu0 0
    %352 = vmatprep.subr.bf16.mxu0 0
    %353 = vmatpush1.bf16.msra.mxu0 0
    %354 = vmatprep.subr.bf16.mxu0 0
    %355 = vmatpush1.bf16.msra.mxu0 0
    %356 = vmatprep.subr.bf16.mxu0 0
    %357 = vmatpush1.bf16.msra.mxu0 0
    %358 = vmatprep.mubr.bf16.mxu0 0
    %359 = vmatmul.mubr.bf16.gmra.mrb[0].mxu0 %v246
    %v360 = vpop.f32.mrb[0].mxu0
    %v361 = vadd.f32 0.0, %v360
    %v362 = vpop.f32.mrb[0].mxu0
    %v363 = vpop.f32.mrb[0].mxu0
    %v364 = vadd.f32 0.0, %v363
    %v365 = vpop.f32.mrb[0].mxu0
    %366 = vmatprep.mubr.bf16.mxu0 0
    %367 = vmatmul.mubr.bf16.gmra.mrb[0].mxu0 %v247
    %v368 = vpop.f32.mrb[0].mxu0
    %v369 = vadd.f32 0.0, %v368
    %v370 = vpop.f32.mrb[0].mxu0
    %v371 = vpop.f32.mrb[0].mxu0
    %v372 = vadd.f32 0.0, %v371
    %v373 = vpop.f32.mrb[0].mxu0
    %374 = vmatprep.mubr.bf16.mxu0 0
    %375 = vmatmul.mubr.bf16.gmra.mrb[0].mxu0 %v248
    %v376 = vpop.f32.mrb[0].mxu0
    %v377 = vadd.f32 0.0, %v376
    %v378 = vpop.f32.mrb[0].mxu0
    %v379 = vpop.f32.mrb[0].mxu0
    %v380 = vadd.f32 0.0, %v379
    %v381 = vpop.f32.mrb[0].mxu0
    %382 = vmatprep.mubr.bf16.mxu0 0
    %383 = vmatmul.mubr.bf16.gmra.mrb[0].mxu0 %v249
    %v384 = vpop.f32.mrb[0].mxu0
    %v385 = vadd.f32 0.0, %v384
    %v386 = vpop.f32.mrb[0].mxu0
    %v387 = vpop.f32.mrb[0].mxu0
    %v388 = vadd.f32 0.0, %v387
    %v389 = vpop.f32.mrb[0].mxu0
    %390 = vmatprep.mubr.bf16.mxu0 0
    %391 = vmatmul.mubr.bf16.gmra.mrb[0].mxu0 %v250
    %v392 = vpop.f32.mrb[0].mxu0
    %v393 = vadd.f32 0.0, %v392
    %v394 = vpop.f32.mrb[0].mxu0
    %v395 = vpop.f32.mrb[0].mxu0
    %v396 = vadd.f32 0.0, %v395
    %v397 = vpop.f32.mrb[0].mxu0
    %398 = vmatprep.mubr.bf16.mxu0 0
    %399 = vmatmul.mubr.bf16.gmra.mrb[0].mxu0 %v251
    %v400 = vpop.f32.mrb[0].mxu0
    %v401 = vadd.f32 0.0, %v400
    %v402 = vpop.f32.mrb[0].mxu0
    %v403 = vpop.f32.mrb[0].mxu0
    %v404 = vadd.f32 0.0, %v403
    %v405 = vpop.f32.mrb[0].mxu0
    %406 = vmatprep.mubr.bf16.mxu0 0
    %407 = vmatmul.mubr.bf16.gmra.mrb[0].mxu0 %v252
    %v408 = vpop.f32.mrb[0].mxu0
    %v409 = vadd.f32 0.0, %v408
    %v410 = vpop.f32.mrb[0].mxu0
    %v411 = vpop.f32.mrb[0].mxu0
    %v412 = vadd.f32 0.0, %v411
    %v413 = vpop.f32.mrb[0].mxu0
    %414 = vmatprep.mubr.bf16.mxu0 0
    %415 = vmatmul.mubr.bf16.gmra.mrb[0].mxu0 %v253
    %v416 = vpop.f32.mrb[0].mxu0
    %v417 = vadd.f32 0.0, %v416
    %v418 = vpop.f32.mrb[0].mxu0
    %v419 = vpop.f32.mrb[0].mxu0
    %v420 = vadd.f32 0.0, %v419
    %v421 = vpop.f32.mrb[0].mxu0
    %422 = vmatprep.mubr.bf16.mxu0 0
    %423 = vmatmul.mubr.bf16.gmra.mrb[0].mxu0 %v254
    %v424 = vpop.f32.mrb[0].mxu0
    %v425 = vadd.f32 0.0, %v424
    %v426 = vpop.f32.mrb[0].mxu0
    %v427 = vpop.f32.mrb[0].mxu0
    %v428 = vadd.f32 0.0, %v427
    %v429 = vpop.f32.mrb[0].mxu0
    %430 = vmatprep.mubr.bf16.mxu0 0
    %431 = vmatmul.mubr.bf16.gmra.mrb[0].mxu0 %v255
    %v432 = vpop.f32.mrb[0].mxu0
    %v433 = vadd.f32 0.0, %v432
    %v434 = vpop.f32.mrb[0].mxu0
    %v435 = vpop.f32.mrb[0].mxu0
    %v436 = vadd.f32 0.0, %v435
    %v437 = vpop.f32.mrb[0].mxu0
    %438 = vmatprep.mubr.bf16.mxu0 0
    %439 = vmatmul.mubr.bf16.gmra.mrb[0].mxu0 %v256
    %v440 = vpop.f32.mrb[0].mxu0
    %v441 = vadd.f32 0.0, %v440
    %v442 = vpop.f32.mrb[0].mxu0
    %v443 = vpop.f32.mrb[0].mxu0
    %v444 = vadd.f32 0.0, %v443
    %v445 = vpop.f32.mrb[0].mxu0
    %446 = vmatprep.mubr.bf16.mxu0 0
    %447 = vmatmul.mubr.bf16.gmra.mrb[0].mxu0 %v257
    %v448 = vpop.f32.mrb[0].mxu0
    %v449 = vadd.f32 0.0, %v448
    %v450 = vpop.f32.mrb[0].mxu0
    %v451 = vpop.f32.mrb[0].mxu0
    %v452 = vadd.f32 0.0, %v451
    %v453 = vpop.f32.mrb[0].mxu0
    %454 = vmatprep.mubr.bf16.mxu0 0
    %455 = vmatmul.mubr.bf16.gmra.mrb[0].mxu0 %v258
    %v456 = vpop.f32.mrb[0].mxu0
    %v457 = vadd.f32 0.0, %v456
    %v458 = vpop.f32.mrb[0].mxu0
    %v459 = vpop.f32.mrb[0].mxu0
    %v460 = vadd.f32 0.0, %v459
    %v461 = vpop.f32.mrb[0].mxu0
    %462 = vmatprep.mubr.bf16.mxu0 0
    %463 = vmatmul.mubr.bf16.gmra.mrb[0].mxu0 %v259
    %v464 = vpop.f32.mrb[0].mxu0
    %v465 = vadd.f32 0.0, %v464
    %v466 = vpop.f32.mrb[0].mxu0
    %v467 = vpop.f32.mrb[0].mxu0
    %v468 = vadd.f32 0.0, %v467
    %v469 = vpop.f32.mrb[0].mxu0
    %470 = vmatprep.mubr.bf16.mxu0 0
    %471 = vmatmul.mubr.bf16.gmra.mrb[0].mxu0 %v260
    %v472 = vpop.f32.mrb[0].mxu0
    %v473 = vadd.f32 0.0, %v472
    %v474 = vpop.f32.mrb[0].mxu0
    %v475 = vpop.f32.mrb[0].mxu0
    %v476 = vadd.f32 0.0, %v475
    %v477 = vpop.f32.mrb[0].mxu0
    %478 = vmatprep.mubr.bf16.mxu0 0
    %479 = vmatmul.mubr.bf16.gmra.mrb[0].mxu0 %v261
    %v480 = vpop.f32.mrb[0].mxu0
    %v481 = vadd.f32 0.0, %v480
    %v482 = vpop.f32.mrb[0].mxu0
    %v483 = vpop.f32.mrb[0].mxu0
    %v484 = vadd.f32 0.0, %v483
    %v485 = vpop.f32.mrb[0].mxu0
    %486 = vdwg.mxu0
    %v487 = vpack.c.bf16 %v364, %v361
    %v488 = vpack.c.bf16 %v372, %v369
    %v489 = vpack.c.bf16 %v380, %v377
    %v490 = vpack.c.bf16 %v388, %v385
    %v491 = vpack.c.bf16 %v396, %v393
    %v492 = vpack.c.bf16 %v404, %v401
    %v493 = vpack.c.bf16 %v412, %v409
    %v494 = vpack.c.bf16 %v420, %v417
    %v495 = vpack.c.bf16 %v428, %v425
    %v496 = vpack.c.bf16 %v436, %v433
    %v497 = vpack.c.bf16 %v444, %v441
    %v498 = vpack.c.bf16 %v452, %v449
    %v499 = vpack.c.bf16 %v460, %v457
    %v500 = vpack.c.bf16 %v468, %v465
    %v501 = vpack.c.bf16 %v476, %v473
    %v502 = vpack.c.bf16 %v484, %v481
    %v535 = vunpack.c.l.b16 %v102
    %v536 = vunpack.c.h.b16 %v102
    %v537 = vunpack.c.l.b16 %v103
    %v538 = vunpack.c.h.b16 %v103
    %v539 = vunpack.c.l.b16 %v104
    %v540 = vunpack.c.h.b16 %v104
    %v541 = vunpack.c.l.b16 %v105
    %v542 = vunpack.c.h.b16 %v105
    %v543 = vunpack.c.l.b16 %v106
    %v544 = vunpack.c.h.b16 %v106
    %v545 = vunpack.c.l.b16 %v107
    %v546 = vunpack.c.h.b16 %v107
    %v547 = vunpack.c.l.b16 %v108
    %v548 = vunpack.c.h.b16 %v108
    %v549 = vunpack.c.l.b16 %v109
    %v550 = vunpack.c.h.b16 %v109
    %v551 = vunpack.c.l.b16 %v110
    %v552 = vunpack.c.h.b16 %v110
    %v553 = vunpack.c.l.b16 %v111
    %v554 = vunpack.c.h.b16 %v111
    %v555 = vunpack.c.l.b16 %v112
    %v556 = vunpack.c.h.b16 %v112
    %v557 = vunpack.c.l.b16 %v113
    %v558 = vunpack.c.h.b16 %v113
    %v559 = vunpack.c.l.b16 %v114
    %v560 = vunpack.c.h.b16 %v114
    %v561 = vunpack.c.l.b16 %v115
    %v562 = vunpack.c.h.b16 %v115
    %v563 = vunpack.c.l.b16 %v116
    %v564 = vunpack.c.h.b16 %v116
    %v565 = vunpack.c.l.b16 %v117
    %v566 = vunpack.c.h.b16 %v117
    %v567 = vunpack.c.l.b16 %v118
    %v568 = vunpack.c.h.b16 %v118
    %v569 = vunpack.c.l.b16 %v119
    %v570 = vunpack.c.h.b16 %v119
    %v571 = vunpack.c.l.b16 %v120
    %v572 = vunpack.c.h.b16 %v120
    %v573 = vunpack.c.l.b16 %v121
    %v574 = vunpack.c.h.b16 %v121
    %v575 = vunpack.c.l.b16 %v122
    %v576 = vunpack.c.h.b16 %v122
    %v577 = vunpack.c.l.b16 %v123
    %v578 = vunpack.c.h.b16 %v123
    %v579 = vunpack.c.l.b16 %v124
    %v580 = vunpack.c.h.b16 %v124
    %v581 = vunpack.c.l.b16 %v125
    %v582 = vunpack.c.h.b16 %v125
    %v583 = vunpack.c.l.b16 %v126
    %v584 = vunpack.c.h.b16 %v126
    %v585 = vunpack.c.l.b16 %v127
    %v586 = vunpack.c.h.b16 %v127
    %v587 = vunpack.c.l.b16 %v128
    %v588 = vunpack.c.h.b16 %v128
    %v589 = vunpack.c.l.b16 %v129
    %v590 = vunpack.c.h.b16 %v129
    %v591 = vunpack.c.l.b16 %v130
    %v592 = vunpack.c.h.b16 %v130
    %v593 = vunpack.c.l.b16 %v131
    %v594 = vunpack.c.h.b16 %v131
    %v595 = vunpack.c.l.b16 %v132
    %v596 = vunpack.c.h.b16 %v132
    %v597 = vunpack.c.l.b16 %v133
    %v598 = vunpack.c.h.b16 %v133
    %v599 = vpack.c.b16 %v537, %v535
    %v600 = vpack.c.b16 %v538, %v536
    %v601 = vpack.c.b16 %v541, %v539
    %v602 = vpack.c.b16 %v542, %v540
    %v603 = vpack.c.b16 %v545, %v543
    %v604 = vpack.c.b16 %v546, %v544
    %v605 = vpack.c.b16 %v549, %v547
    %v606 = vpack.c.b16 %v550, %v548
    %v607 = vpack.c.b16 %v553, %v551
    %v608 = vpack.c.b16 %v554, %v552
    %v609 = vpack.c.b16 %v557, %v555
    %v610 = vpack.c.b16 %v558, %v556
    %v611 = vpack.c.b16 %v561, %v559
    %v612 = vpack.c.b16 %v562, %v560
    %v613 = vpack.c.b16 %v565, %v563
    %v614 = vpack.c.b16 %v566, %v564
    %v615 = vpack.c.b16 %v569, %v567
    %v616 = vpack.c.b16 %v570, %v568
    %v617 = vpack.c.b16 %v573, %v571
    %v618 = vpack.c.b16 %v574, %v572
    %v619 = vpack.c.b16 %v577, %v575
    %v620 = vpack.c.b16 %v578, %v576
    %v621 = vpack.c.b16 %v581, %v579
    %v622 = vpack.c.b16 %v582, %v580
    %v623 = vpack.c.b16 %v585, %v583
    %v624 = vpack.c.b16 %v586, %v584
    %v625 = vpack.c.b16 %v589, %v587
    %v626 = vpack.c.b16 %v590, %v588
    %v627 = vpack.c.b16 %v593, %v591
    %v628 = vpack.c.b16 %v594, %v592
    %v629 = vpack.c.b16 %v597, %v595
    %v630 = vpack.c.b16 %v598, %v596
    %663 = vmatprep.subr.bf16.mxu0 0
    %664 = vmatpush1.bf16.msra.mxu0 %v487
    %665 = vmatprep.subr.bf16.mxu0 0
    %666 = vmatpush1.bf16.msra.mxu0 %v488
    %667 = vmatprep.subr.bf16.mxu0 0
    %668 = vmatpush1.bf16.msra.mxu0 %v489
    %669 = vmatprep.subr.bf16.mxu0 0
    %670 = vmatpush1.bf16.msra.mxu0 %v490
    %671 = vmatprep.subr.bf16.mxu0 0
    %672 = vmatpush1.bf16.msra.mxu0 %v491
    %673 = vmatprep.subr.bf16.mxu0 0
    %674 = vmatpush1.bf16.msra.mxu0 %v492
    %675 = vmatprep.subr.bf16.mxu0 0
    %676 = vmatpush1.bf16.msra.mxu0 %v493
    %677 = vmatprep.subr.bf16.mxu0 0
    %678 = vmatpush1.bf16.msra.mxu0 %v494
    %679 = vmatprep.subr.bf16.mxu0 0
    %680 = vmatpush1.bf16.msra.mxu0 %v495
    %681 = vmatprep.subr.bf16.mxu0 0
    %682 = vmatpush1.bf16.msra.mxu0 %v496
    %683 = vmatprep.subr.bf16.mxu0 0
    %684 = vmatpush1.bf16.msra.mxu0 %v497
    %685 = vmatprep.subr.bf16.mxu0 0
    %686 = vmatpush1.bf16.msra.mxu0 %v498
    %687 = vmatprep.subr.bf16.mxu0 0
    %688 = vmatpush1.bf16.msra.mxu0 %v499
    %689 = vmatprep.subr.bf16.mxu0 0
    %690 = vmatpush1.bf16.msra.mxu0 %v500
    %691 = vmatprep.subr.bf16.mxu0 0
    %692 = vmatpush1.bf16.msra.mxu0 %v501
    %693 = vmatprep.subr.bf16.mxu0 0
    %694 = vmatpush1.bf16.msra.mxu0 %v502
    %695 = vmatprep.mubr.bf16.mxu0 %v600
    %696 = vmatmul.mubr.bf16.gmra.mrb[0].mxu0 %v599
    %v697 = vpop.f32.mrb[0].mxu0
    %v698 = vadd.f32 %v361, %v697
    %v699 = vpop.f32.mrb[0].mxu0
    %v700 = vpop.f32.mrb[0].mxu0
    %v701 = vadd.f32 %v364, %v700
    %v702 = vpop.f32.mrb[0].mxu0
    %703 = vmatprep.mubr.bf16.mxu0 %v602
    %704 = vmatmul.mubr.bf16.gmra.mrb[0].mxu0 %v601
    %v705 = vpop.f32.mrb[0].mxu0
    %v706 = vadd.f32 %v369, %v705
    %v707 = vpop.f32.mrb[0].mxu0
    %v708 = vpop.f32.mrb[0].mxu0
    %v709 = vadd.f32 %v372, %v708
    %v710 = vpop.f32.mrb[0].mxu0
    %711 = vmatprep.mubr.bf16.mxu0 %v604
    %712 = vmatmul.mubr.bf16.gmra.mrb[0].mxu0 %v603
    %v713 = vpop.f32.mrb[0].mxu0
    %v714 = vadd.f32 %v377, %v713
    %v715 = vpop.f32.mrb[0].mxu0
    %v716 = vpop.f32.mrb[0].mxu0
    %v717 = vadd.f32 %v380, %v716
    %v718 = vpop.f32.mrb[0].mxu0
    %719 = vmatprep.mubr.bf16.mxu0 %v606
    %720 = vmatmul.mubr.bf16.gmra.mrb[0].mxu0 %v605
    %v721 = vpop.f32.mrb[0].mxu0
    %v722 = vadd.f32 %v385, %v721
    %v723 = vpop.f32.mrb[0].mxu0
    %v724 = vpop.f32.mrb[0].mxu0
    %v725 = vadd.f32 %v388, %v724
    %v726 = vpop.f32.mrb[0].mxu0
    %727 = vmatprep.mubr.bf16.mxu0 %v608
    %728 = vmatmul.mubr.bf16.gmra.mrb[0].mxu0 %v607
    %v729 = vpop.f32.mrb[0].mxu0
    %v730 = vadd.f32 %v393, %v729
    %v731 = vpop.f32.mrb[0].mxu0
    %v732 = vpop.f32.mrb[0].mxu0
    %v733 = vadd.f32 %v396, %v732
    %v734 = vpop.f32.mrb[0].mxu0
    %735 = vmatprep.mubr.bf16.mxu0 %v610
    %736 = vmatmul.mubr.bf16.gmra.mrb[0].mxu0 %v609
    %v737 = vpop.f32.mrb[0].mxu0
    %v738 = vadd.f32 %v401, %v737
    %v739 = vpop.f32.mrb[0].mxu0
    %v740 = vpop.f32.mrb[0].mxu0
    %v741 = vadd.f32 %v404, %v740
    %v742 = vpop.f32.mrb[0].mxu0
    %743 = vmatprep.mubr.bf16.mxu0 %v612
    %744 = vmatmul.mubr.bf16.gmra.mrb[0].mxu0 %v611
    %v745 = vpop.f32.mrb[0].mxu0
    %v746 = vadd.f32 %v409, %v745
    %v747 = vpop.f32.mrb[0].mxu0
    %v748 = vpop.f32.mrb[0].mxu0
    %v749 = vadd.f32 %v412, %v748
    %v750 = vpop.f32.mrb[0].mxu0
    %751 = vmatprep.mubr.bf16.mxu0 %v614
    %752 = vmatmul.mubr.bf16.gmra.mrb[0].mxu0 %v613
    %v753 = vpop.f32.mrb[0].mxu0
    %v754 = vadd.f32 %v417, %v753
    %v755 = vpop.f32.mrb[0].mxu0
    %v756 = vpop.f32.mrb[0].mxu0
    %v757 = vadd.f32 %v420, %v756
    %v758 = vpop.f32.mrb[0].mxu0
    %759 = vmatprep.mubr.bf16.mxu0 %v616
    %760 = vmatmul.mubr.bf16.gmra.mrb[0].mxu0 %v615
    %v761 = vpop.f32.mrb[0].mxu0
    %v762 = vadd.f32 %v425, %v761
    %v763 = vpop.f32.mrb[0].mxu0
    %v764 = vpop.f32.mrb[0].mxu0
    %v765 = vadd.f32 %v428, %v764
    %v766 = vpop.f32.mrb[0].mxu0
    %767 = vmatprep.mubr.bf16.mxu0 %v618
    %768 = vmatmul.mubr.bf16.gmra.mrb[0].mxu0 %v617
    %v769 = vpop.f32.mrb[0].mxu0
    %v770 = vadd.f32 %v433, %v769
    %v771 = vpop.f32.mrb[0].mxu0
    %v772 = vpop.f32.mrb[0].mxu0
    %v773 = vadd.f32 %v436, %v772
    %v774 = vpop.f32.mrb[0].mxu0
    %775 = vmatprep.mubr.bf16.mxu0 %v620
    %776 = vmatmul.mubr.bf16.gmra.mrb[0].mxu0 %v619
    %v777 = vpop.f32.mrb[0].mxu0
    %v778 = vadd.f32 %v441, %v777
    %v779 = vpop.f32.mrb[0].mxu0
    %v780 = vpop.f32.mrb[0].mxu0
    %v781 = vadd.f32 %v444, %v780
    %v782 = vpop.f32.mrb[0].mxu0
    %783 = vmatprep.mubr.bf16.mxu0 %v622
    %784 = vmatmul.mubr.bf16.gmra.mrb[0].mxu0 %v621
    %v785 = vpop.f32.mrb[0].mxu0
    %v786 = vadd.f32 %v449, %v785
    %v787 = vpop.f32.mrb[0].mxu0
    %v788 = vpop.f32.mrb[0].mxu0
    %v789 = vadd.f32 %v452, %v788
    %v790 = vpop.f32.mrb[0].mxu0
    %791 = vmatprep.mubr.bf16.mxu0 %v624
    %792 = vmatmul.mubr.bf16.gmra.mrb[0].mxu0 %v623
    %v793 = vpop.f32.mrb[0].mxu0
    %v794 = vadd.f32 %v457, %v793
    %v795 = vpop.f32.mrb[0].mxu0
    %v796 = vpop.f32.mrb[0].mxu0
    %v797 = vadd.f32 %v460, %v796
    %v798 = vpop.f32.mrb[0].mxu0
    %799 = vmatprep.mubr.bf16.mxu0 %v626
    %800 = vmatmul.mubr.bf16.gmra.mrb[0].mxu0 %v625
    %v801 = vpop.f32.mrb[0].mxu0
    %v802 = vadd.f32 %v465, %v801
    %v803 = vpop.f32.mrb[0].mxu0
    %v804 = vpop.f32.mrb[0].mxu0
    %v805 = vadd.f32 %v468, %v804
    %v806 = vpop.f32.mrb[0].mxu0
    %807 = vmatprep.mubr.bf16.mxu0 %v628
    %808 = vmatmul.mubr.bf16.gmra.mrb[0].mxu0 %v627
    %v809 = vpop.f32.mrb[0].mxu0
    %v810 = vadd.f32 %v473, %v809
    %v811 = vpop.f32.mrb[0].mxu0
    %v812 = vpop.f32.mrb[0].mxu0
    %v813 = vadd.f32 %v476, %v812
    %v814 = vpop.f32.mrb[0].mxu0
    %815 = vmatprep.mubr.bf16.mxu0 %v630
    %816 = vmatmul.mubr.bf16.gmra.mrb[0].mxu0 %v629
    %v817 = vpop.f32.mrb[0].mxu0
    %v818 = vadd.f32 %v481, %v817
    %v819 = vpop.f32.mrb[0].mxu0
    %v820 = vpop.f32.mrb[0].mxu0
    %v821 = vadd.f32 %v484, %v820
    %v822 = vpop.f32.mrb[0].mxu0
    %823 = vdwg.mxu0
    %v824 = vld [vmem:[%s3] sm:$0x1]
    %v826 = vlaneseq
    %v827 = vshrl.u32 %v826, 7
    %v828 = vsub.s32 0, %v827
    %v829 = vrot.slane %v824, %v828
    %v831 = vadd.f32 %v698, %v829
    %v832 = vadd.f32 %v701, %v829
    %v833 = vadd.f32 %v706, %v829
    %v834 = vadd.f32 %v709, %v829
    %v835 = vadd.f32 %v714, %v829
    %v836 = vadd.f32 %v717, %v829
    %v837 = vadd.f32 %v722, %v829
    %v838 = vadd.f32 %v725, %v829
    %v839 = vadd.f32 %v730, %v829
    %v840 = vadd.f32 %v733, %v829
    %v841 = vadd.f32 %v738, %v829
    %v842 = vadd.f32 %v741, %v829
    %v843 = vadd.f32 %v746, %v829
    %v844 = vadd.f32 %v749, %v829
    %v845 = vadd.f32 %v754, %v829
    %v846 = vadd.f32 %v757, %v829
    %v847 = vadd.f32 %v762, %v829
    %v848 = vadd.f32 %v765, %v829
    %v849 = vadd.f32 %v770, %v829
    %v850 = vadd.f32 %v773, %v829
    %v851 = vadd.f32 %v778, %v829
    %v852 = vadd.f32 %v781, %v829
    %v853 = vadd.f32 %v786, %v829
    %v854 = vadd.f32 %v789, %v829
    %v855 = vadd.f32 %v794, %v829
    %v856 = vadd.f32 %v797, %v829
    %v857 = vadd.f32 %v802, %v829
    %v858 = vadd.f32 %v805, %v829
    %v859 = vadd.f32 %v810, %v829
    %v860 = vadd.f32 %v813, %v829
    %v861 = vadd.f32 %v818, %v829
    %v862 = vadd.f32 %v821, %v829
    %v863 = vmax.f32 %v831, 0.0
    %v864 = vmax.f32 %v832, 0.0
    %v865 = vmax.f32 %v833, 0.0
    %v866 = vmax.f32 %v834, 0.0
    %v867 = vmax.f32 %v835, 0.0
    %v868 = vmax.f32 %v836, 0.0
    %v869 = vmax.f32 %v837, 0.0
    %v870 = vmax.f32 %v838, 0.0
    %v871 = vmax.f32 %v839, 0.0
    %v872 = vmax.f32 %v840, 0.0
    %v873 = vmax.f32 %v841, 0.0
    %v874 = vmax.f32 %v842, 0.0
    %v875 = vmax.f32 %v843, 0.0
    %v876 = vmax.f32 %v844, 0.0
    %v877 = vmax.f32 %v845, 0.0
    %v878 = vmax.f32 %v846, 0.0
    %v879 = vmax.f32 %v847, 0.0
    %v880 = vmax.f32 %v848, 0.0
    %v881 = vmax.f32 %v849, 0.0
    %v882 = vmax.f32 %v850, 0.0
    %v883 = vmax.f32 %v851, 0.0
    %v884 = vmax.f32 %v852, 0.0
    %v885 = vmax.f32 %v853, 0.0
    %v886 = vmax.f32 %v854, 0.0
    %v887 = vmax.f32 %v855, 0.0
    %v888 = vmax.f32 %v856, 0.0
    %v889 = vmax.f32 %v857, 0.0
    %v890 = vmax.f32 %v858, 0.0
    %v891 = vmax.f32 %v859, 0.0
    %v892 = vmax.f32 %v860, 0.0
    %v893 = vmax.f32 %v861, 0.0
    %v894 = vmax.f32 %v862, 0.0
    %v895 = vpack.c.bf16 %v864, %v863
    %v896 = vpack.c.bf16 %v866, %v865
    %v897 = vpack.c.bf16 %v868, %v867
    %v898 = vpack.c.bf16 %v870, %v869
    %v899 = vpack.c.bf16 %v872, %v871
    %v900 = vpack.c.bf16 %v874, %v873
    %v901 = vpack.c.bf16 %v876, %v875
    %v902 = vpack.c.bf16 %v878, %v877
    %v903 = vpack.c.bf16 %v880, %v879
    %v904 = vpack.c.bf16 %v882, %v881
    %v905 = vpack.c.bf16 %v884, %v883
    %v906 = vpack.c.bf16 %v886, %v885
    %v907 = vpack.c.bf16 %v888, %v887
    %v908 = vpack.c.bf16 %v890, %v889
    %v909 = vpack.c.bf16 %v892, %v891
    %v910 = vpack.c.bf16 %v894, %v893
    %v911 = vld [vmem:[#allocation8] sm:$0xf]
    %v912 = vld [vmem:[#allocation8 + $0x4] sm:$0xf]
    %v913 = vld [vmem:[#allocation8 + $0x8] sm:$0xf]
    %v914 = vld [vmem:[#allocation8 + $0xc] sm:$0xf]
    %v915 = vld [vmem:[#allocation8 + $0x10] sm:$0xf]
    %v916 = vld [vmem:[#allocation8 + $0x14] sm:$0xf]
    %v917 = vld [vmem:[#allocation8 + $0x18] sm:$0xf]
    %v918 = vld [vmem:[#allocation8 + $0x1c] sm:$0xf]
    %v919 = vld [vmem:[#allocation8 + $0x20] sm:$0xf]
    %v920 = vld [vmem:[#allocation8 + $0x24] sm:$0xf]
    %v921 = vld [vmem:[#allocation8 + $0x28] sm:$0xf]
    %v922 = vld [vmem:[#allocation8 + $0x2c] sm:$0xf]
    %v923 = vld [vmem:[#allocation8 + $0x30] sm:$0xf]
    %v924 = vld [vmem:[#allocation8 + $0x34] sm:$0xf]
    %v925 = vld [vmem:[#allocation8 + $0x38] sm:$0xf]
    %v926 = vld [vmem:[#allocation8 + $0x3c] sm:$0xf]
    %v943 = vunpack.c.l.b16 %v911
    %v944 = vunpack.c.l.b16 %v912
    %v945 = vunpack.c.l.b16 %v913
    %v946 = vunpack.c.l.b16 %v914
    %v947 = vunpack.c.l.b16 %v915
    %v948 = vunpack.c.l.b16 %v916
    %v949 = vunpack.c.l.b16 %v917
    %v950 = vunpack.c.l.b16 %v918
    %v951 = vunpack.c.l.b16 %v919
    %v952 = vunpack.c.l.b16 %v920
    %v953 = vunpack.c.l.b16 %v921
    %v954 = vunpack.c.l.b16 %v922
    %v955 = vunpack.c.l.b16 %v923
    %v956 = vunpack.c.l.b16 %v924
    %v957 = vunpack.c.l.b16 %v925
    %v958 = vunpack.c.l.b16 %v926
    %v959 = vpack.c.b16 %v944, %v943
    %v960 = vpack.c.b16 %v946, %v945
    %v961 = vpack.c.b16 %v948, %v947
    %v962 = vpack.c.b16 %v950, %v949
    %v963 = vpack.c.b16 %v952, %v951
    %v964 = vpack.c.b16 %v954, %v953
    %v965 = vpack.c.b16 %v956, %v955
    %v966 = vpack.c.b16 %v958, %v957
    %975 = vmatprep.subr.bf16.mxu0 0
    %976 = vmatpush1.bf16.msra.mxu0 %v959
    %977 = vmatprep.subr.bf16.mxu0 0
    %978 = vmatpush1.bf16.msra.mxu0 %v960
    %979 = vmatprep.subr.bf16.mxu0 0
    %980 = vmatpush1.bf16.msra.mxu0 %v961
    %981 = vmatprep.subr.bf16.mxu0 0
    %982 = vmatpush1.bf16.msra.mxu0 %v962
    %983 = vmatprep.subr.bf16.mxu0 0
    %984 = vmatpush1.bf16.msra.mxu0 %v963
    %985 = vmatprep.subr.bf16.mxu0 0
    %986 = vmatpush1.bf16.msra.mxu0 %v964
    %987 = vmatprep.subr.bf16.mxu0 0
    %988 = vmatpush1.bf16.msra.mxu0 %v965
    %989 = vmatprep.subr.bf16.mxu0 0
    %990 = vmatpush1.bf16.msra.mxu0 %v966
    %991 = vmatprep.subr.bf16.mxu0 0
    %992 = vmatpush1.bf16.msra.mxu0 0
    %993 = vmatprep.subr.bf16.mxu0 0
    %994 = vmatpush1.bf16.msra.mxu0 0
    %995 = vmatprep.subr.bf16.mxu0 0
    %996 = vmatpush1.bf16.msra.mxu0 0
    %997 = vmatprep.subr.bf16.mxu0 0
    %998 = vmatpush1.bf16.msra.mxu0 0
    %999 = vmatprep.subr.bf16.mxu0 0
    %1000 = vmatpush1.bf16.msra.mxu0 0
    %1001 = vmatprep.subr.bf16.mxu0 0
    %1002 = vmatpush1.bf16.msra.mxu0 0
    %1003 = vmatprep.subr.bf16.mxu0 0
    %1004 = vmatpush1.bf16.msra.mxu0 0
    %1005 = vmatprep.subr.bf16.mxu0 0
    %1006 = vmatpush1.bf16.msra.mxu0 0
    %1007 = vmatprep.mubr.bf16.mxu0 0
    %1008 = vmatmul.mubr.bf16.gmra.mrb[0].mxu0 %v895
    %v1009 = vpop.f32.mrb[0].mxu0
    %v1010 = vadd.f32 0.0, %v1009
    %v1011 = vpop.f32.mrb[0].mxu0
    %v1012 = vpop.f32.mrb[0].mxu0
    %v1013 = vadd.f32 0.0, %v1012
    %v1014 = vpop.f32.mrb[0].mxu0
    %1015 = vmatprep.mubr.bf16.mxu0 0
    %1016 = vmatmul.mubr.bf16.gmra.mrb[0].mxu0 %v896
    %v1017 = vpop.f32.mrb[0].mxu0
    %v1018 = vadd.f32 0.0, %v1017
    %v1019 = vpop.f32.mrb[0].mxu0
    %v1020 = vpop.f32.mrb[0].mxu0
    %v1021 = vadd.f32 0.0, %v1020
    %v1022 = vpop.f32.mrb[0].mxu0
    %1023 = vmatprep.mubr.bf16.mxu0 0
    %1024 = vmatmul.mubr.bf16.gmra.mrb[0].mxu0 %v897
    %v1025 = vpop.f32.mrb[0].mxu0
    %v1026 = vadd.f32 0.0, %v1025
    %v1027 = vpop.f32.mrb[0].mxu0
    %v1028 = vpop.f32.mrb[0].mxu0
    %v1029 = vadd.f32 0.0, %v1028
    %v1030 = vpop.f32.mrb[0].mxu0
    %1031 = vmatprep.mubr.bf16.mxu0 0
    %1032 = vmatmul.mubr.bf16.gmra.mrb[0].mxu0 %v898
    %v1033 = vpop.f32.mrb[0].mxu0
    %v1034 = vadd.f32 0.0, %v1033
    %v1035 = vpop.f32.mrb[0].mxu0
    %v1036 = vpop.f32.mrb[0].mxu0
    %v1037 = vadd.f32 0.0, %v1036
    %v1038 = vpop.f32.mrb[0].mxu0
    %1039 = vmatprep.mubr.bf16.mxu0 0
    %1040 = vmatmul.mubr.bf16.gmra.mrb[0].mxu0 %v899
    %v1041 = vpop.f32.mrb[0].mxu0
    %v1042 = vadd.f32 0.0, %v1041
    %v1043 = vpop.f32.mrb[0].mxu0
    %v1044 = vpop.f32.mrb[0].mxu0
    %v1045 = vadd.f32 0.0, %v1044
    %v1046 = vpop.f32.mrb[0].mxu0
    %1047 = vmatprep.mubr.bf16.mxu0 0
    %1048 = vmatmul.mubr.bf16.gmra.mrb[0].mxu0 %v900
    %v1049 = vpop.f32.mrb[0].mxu0
    %v1050 = vadd.f32 0.0, %v1049
    %v1051 = vpop.f32.mrb[0].mxu0
    %v1052 = vpop.f32.mrb[0].mxu0
    %v1053 = vadd.f32 0.0, %v1052
    %v1054 = vpop.f32.mrb[0].mxu0
    %1055 = vmatprep.mubr.bf16.mxu0 0
    %1056 = vmatmul.mubr.bf16.gmra.mrb[0].mxu0 %v901
    %v1057 = vpop.f32.mrb[0].mxu0
    %v1058 = vadd.f32 0.0, %v1057
    %v1059 = vpop.f32.mrb[0].mxu0
    %v1060 = vpop.f32.mrb[0].mxu0
    %v1061 = vadd.f32 0.0, %v1060
    %v1062 = vpop.f32.mrb[0].mxu0
    %1063 = vmatprep.mubr.bf16.mxu0 0
    %1064 = vmatmul.mubr.bf16.gmra.mrb[0].mxu0 %v902
    %v1065 = vpop.f32.mrb[0].mxu0
    %v1066 = vadd.f32 0.0, %v1065
    %v1067 = vpop.f32.mrb[0].mxu0
    %v1068 = vpop.f32.mrb[0].mxu0
    %v1069 = vadd.f32 0.0, %v1068
    %v1070 = vpop.f32.mrb[0].mxu0
    %1071 = vmatprep.mubr.bf16.mxu0 0
    %1072 = vmatmul.mubr.bf16.gmra.mrb[0].mxu0 %v903
    %v1073 = vpop.f32.mrb[0].mxu0
    %v1074 = vadd.f32 0.0, %v1073
    %v1075 = vpop.f32.mrb[0].mxu0
    %v1076 = vpop.f32.mrb[0].mxu0
    %v1077 = vadd.f32 0.0, %v1076
    %v1078 = vpop.f32.mrb[0].mxu0
    %1079 = vmatprep.mubr.bf16.mxu0 0
    %1080 = vmatmul.mubr.bf16.gmra.mrb[0].mxu0 %v904
    %v1081 = vpop.f32.mrb[0].mxu0
    %v1082 = vadd.f32 0.0, %v1081
    %v1083 = vpop.f32.mrb[0].mxu0
    %v1084 = vpop.f32.mrb[0].mxu0
    %v1085 = vadd.f32 0.0, %v1084
    %v1086 = vpop.f32.mrb[0].mxu0
    %1087 = vmatprep.mubr.bf16.mxu0 0
    %1088 = vmatmul.mubr.bf16.gmra.mrb[0].mxu0 %v905
    %v1089 = vpop.f32.mrb[0].mxu0
    %v1090 = vadd.f32 0.0, %v1089
    %v1091 = vpop.f32.mrb[0].mxu0
    %v1092 = vpop.f32.mrb[0].mxu0
    %v1093 = vadd.f32 0.0, %v1092
    %v1094 = vpop.f32.mrb[0].mxu0
    %1095 = vmatprep.mubr.bf16.mxu0 0
    %1096 = vmatmul.mubr.bf16.gmra.mrb[0].mxu0 %v906
    %v1097 = vpop.f32.mrb[0].mxu0
    %v1098 = vadd.f32 0.0, %v1097
    %v1099 = vpop.f32.mrb[0].mxu0
    %v1100 = vpop.f32.mrb[0].mxu0
    %v1101 = vadd.f32 0.0, %v1100
    %v1102 = vpop.f32.mrb[0].mxu0
    %1103 = vmatprep.mubr.bf16.mxu0 0
    %1104 = vmatmul.mubr.bf16.gmra.mrb[0].mxu0 %v907
    %v1105 = vpop.f32.mrb[0].mxu0
    %v1106 = vadd.f32 0.0, %v1105
    %v1107 = vpop.f32.mrb[0].mxu0
    %v1108 = vpop.f32.mrb[0].mxu0
    %v1109 = vadd.f32 0.0, %v1108
    %v1110 = vpop.f32.mrb[0].mxu0
    %1111 = vmatprep.mubr.bf16.mxu0 0
    %1112 = vmatmul.mubr.bf16.gmra.mrb[0].mxu0 %v908
    %v1113 = vpop.f32.mrb[0].mxu0
    %v1114 = vadd.f32 0.0, %v1113
    %v1115 = vpop.f32.mrb[0].mxu0
    %v1116 = vpop.f32.mrb[0].mxu0
    %v1117 = vadd.f32 0.0, %v1116
    %v1118 = vpop.f32.mrb[0].mxu0
    %1119 = vmatprep.mubr.bf16.mxu0 0
    %1120 = vmatmul.mubr.bf16.gmra.mrb[0].mxu0 %v909
    %v1121 = vpop.f32.mrb[0].mxu0
    %v1122 = vadd.f32 0.0, %v1121
    %v1123 = vpop.f32.mrb[0].mxu0
    %v1124 = vpop.f32.mrb[0].mxu0
    %v1125 = vadd.f32 0.0, %v1124
    %v1126 = vpop.f32.mrb[0].mxu0
    %1127 = vmatprep.mubr.bf16.mxu0 0
    %1128 = vmatmul.mubr.bf16.gmra.mrb[0].mxu0 %v910
    %v1129 = vpop.f32.mrb[0].mxu0
    %v1130 = vadd.f32 0.0, %v1129
    %v1131 = vpop.f32.mrb[0].mxu0
    %v1132 = vpop.f32.mrb[0].mxu0
    %v1133 = vadd.f32 0.0, %v1132
    %v1134 = vpop.f32.mrb[0].mxu0
    %1135 = vdwg.mxu0
    %v1136 = vpack.c.bf16 %v1013, %v1010
    %v1137 = vpack.c.bf16 %v1021, %v1018
    %v1138 = vpack.c.bf16 %v1029, %v1026
    %v1139 = vpack.c.bf16 %v1037, %v1034
    %v1140 = vpack.c.bf16 %v1045, %v1042
    %v1141 = vpack.c.bf16 %v1053, %v1050
    %v1142 = vpack.c.bf16 %v1061, %v1058
    %v1143 = vpack.c.bf16 %v1069, %v1066
    %v1144 = vpack.c.bf16 %v1077, %v1074
    %v1145 = vpack.c.bf16 %v1085, %v1082
    %v1146 = vpack.c.bf16 %v1093, %v1090
    %v1147 = vpack.c.bf16 %v1101, %v1098
    %v1148 = vpack.c.bf16 %v1109, %v1106
    %v1149 = vpack.c.bf16 %v1117, %v1114
    %v1150 = vpack.c.bf16 %v1125, %v1122
    %v1151 = vpack.c.bf16 %v1133, %v1130
    %1152 = vmatprep.subr.bf16.mxu0 0
    %1153 = vmatpush1.bf16.msra.mxu0 %v1136
    %1154 = vmatprep.subr.bf16.mxu0 0
    %1155 = vmatpush1.bf16.msra.mxu0 %v1137
    %1156 = vmatprep.subr.bf16.mxu0 0
    %1157 = vmatpush1.bf16.msra.mxu0 %v1138
    %1158 = vmatprep.subr.bf16.mxu0 0
    %1159 = vmatpush1.bf16.msra.mxu0 %v1139
    %1160 = vmatprep.subr.bf16.mxu0 0
    %1161 = vmatpush1.bf16.msra.mxu0 %v1140
    %1162 = vmatprep.subr.bf16.mxu0 0
    %1163 = vmatpush1.bf16.msra.mxu0 %v1141
    %1164 = vmatprep.subr.bf16.mxu0 0
    %1165 = vmatpush1.bf16.msra.mxu0 %v1142
    %1166 = vmatprep.subr.bf16.mxu0 0
    %1167 = vmatpush1.bf16.msra.mxu0 %v1143
    %1168 = vmatprep.subr.bf16.mxu0 0
    %1169 = vmatpush1.bf16.msra.mxu0 %v1144
    %1170 = vmatprep.subr.bf16.mxu0 0
    %1171 = vmatpush1.bf16.msra.mxu0 %v1145
    %1172 = vmatprep.subr.bf16.mxu0 0
    %1173 = vmatpush1.bf16.msra.mxu0 %v1146
    %1174 = vmatprep.subr.bf16.mxu0 0
    %1175 = vmatpush1.bf16.msra.mxu0 %v1147
    %1176 = vmatprep.subr.bf16.mxu0 0
    %1177 = vmatpush1.bf16.msra.mxu0 %v1148
    %1178 = vmatprep.subr.bf16.mxu0 0
    %1179 = vmatpush1.bf16.msra.mxu0 %v1149
    %1180 = vmatprep.subr.bf16.mxu0 0
    %1181 = vmatpush1.bf16.msra.mxu0 %v1150
    %1182 = vmatprep.subr.bf16.mxu0 0
    %1183 = vmatpush1.bf16.msra.mxu0 %v1151
    %1184 = vmatprep.mubr.bf16.mxu0 %v600
    %1185 = vmatmul.mubr.bf16.gmra.mrb[0].mxu0 %v599
    %v1186 = vpop.f32.mrb[0].mxu0
    %v1187 = vadd.f32 %v1010, %v1186
    %v1188 = vpop.f32.mrb[0].mxu0
    %v1189 = vpop.f32.mrb[0].mxu0
    %v1190 = vadd.f32 %v1013, %v1189
    %v1191 = vpop.f32.mrb[0].mxu0
    %1192 = vmatprep.mubr.bf16.mxu0 %v602
    %1193 = vmatmul.mubr.bf16.gmra.mrb[0].mxu0 %v601
    %v1194 = vpop.f32.mrb[0].mxu0
    %v1195 = vadd.f32 %v1018, %v1194
    %v1196 = vpop.f32.mrb[0].mxu0
    %v1197 = vpop.f32.mrb[0].mxu0
    %v1198 = vadd.f32 %v1021, %v1197
    %v1199 = vpop.f32.mrb[0].mxu0
    %1200 = vmatprep.mubr.bf16.mxu0 %v604
    %1201 = vmatmul.mubr.bf16.gmra.mrb[0].mxu0 %v603
    %v1202 = vpop.f32.mrb[0].mxu0
    %v1203 = vadd.f32 %v1026, %v1202
    %v1204 = vpop.f32.mrb[0].mxu0
    %v1205 = vpop.f32.mrb[0].mxu0
    %v1206 = vadd.f32 %v1029, %v1205
    %v1207 = vpop.f32.mrb[0].mxu0
    %1208 = vmatprep.mubr.bf16.mxu0 %v606
    %1209 = vmatmul.mubr.bf16.gmra.mrb[0].mxu0 %v605
    %v1210 = vpop.f32.mrb[0].mxu0
    %v1211 = vadd.f32 %v1034, %v1210
    %v1212 = vpop.f32.mrb[0].mxu0
    %v1213 = vpop.f32.mrb[0].mxu0
    %v1214 = vadd.f32 %v1037, %v1213
    %v1215 = vpop.f32.mrb[0].mxu0
    %1216 = vmatprep.mubr.bf16.mxu0 %v608
    %1217 = vmatmul.mubr.bf16.gmra.mrb[0].mxu0 %v607
    %v1218 = vpop.f32.mrb[0].mxu0
    %v1219 = vadd.f32 %v1042, %v1218
    %v1220 = vpop.f32.mrb[0].mxu0
    %v1221 = vpop.f32.mrb[0].mxu0
    %v1222 = vadd.f32 %v1045, %v1221
    %v1223 = vpop.f32.mrb[0].mxu0
    %1224 = vmatprep.mubr.bf16.mxu0 %v610
    %1225 = vmatmul.mubr.bf16.gmra.mrb[0].mxu0 %v609
    %v1226 = vpop.f32.mrb[0].mxu0
    %v1227 = vadd.f32 %v1050, %v1226
    %v1228 = vpop.f32.mrb[0].mxu0
    %v1229 = vpop.f32.mrb[0].mxu0
    %v1230 = vadd.f32 %v1053, %v1229
    %v1231 = vpop.f32.mrb[0].mxu0
    %1232 = vmatprep.mubr.bf16.mxu0 %v612
    %1233 = vmatmul.mubr.bf16.gmra.mrb[0].mxu0 %v611
    %v1234 = vpop.f32.mrb[0].mxu0
    %v1235 = vadd.f32 %v1058, %v1234
    %v1236 = vpop.f32.mrb[0].mxu0
    %v1237 = vpop.f32.mrb[0].mxu0
    %v1238 = vadd.f32 %v1061, %v1237
    %v1239 = vpop.f32.mrb[0].mxu0
    %1240 = vmatprep.mubr.bf16.mxu0 %v614
    %1241 = vmatmul.mubr.bf16.gmra.mrb[0].mxu0 %v613
    %v1242 = vpop.f32.mrb[0].mxu0
    %v1243 = vadd.f32 %v1066, %v1242
    %v1244 = vpop.f32.mrb[0].mxu0
    %v1245 = vpop.f32.mrb[0].mxu0
    %v1246 = vadd.f32 %v1069, %v1245
    %v1247 = vpop.f32.mrb[0].mxu0
    %1248 = vmatprep.mubr.bf16.mxu0 %v616
    %1249 = vmatmul.mubr.bf16.gmra.mrb[0].mxu0 %v615
    %v1250 = vpop.f32.mrb[0].mxu0
    %v1251 = vadd.f32 %v1074, %v1250
    %v1252 = vpop.f32.mrb[0].mxu0
    %v1253 = vpop.f32.mrb[0].mxu0
    %v1254 = vadd.f32 %v1077, %v1253
    %v1255 = vpop.f32.mrb[0].mxu0
    %1256 = vmatprep.mubr.bf16.mxu0 %v618
    %1257 = vmatmul.mubr.bf16.gmra.mrb[0].mxu0 %v617
    %v1258 = vpop.f32.mrb[0].mxu0
    %v1259 = vadd.f32 %v1082, %v1258
    %v1260 = vpop.f32.mrb[0].mxu0
    %v1261 = vpop.f32.mrb[0].mxu0
    %v1262 = vadd.f32 %v1085, %v1261
    %v1263 = vpop.f32.mrb[0].mxu0
    %1264 = vmatprep.mubr.bf16.mxu0 %v620
    %1265 = vmatmul.mubr.bf16.gmra.mrb[0].mxu0 %v619
    %v1266 = vpop.f32.mrb[0].mxu0
    %v1267 = vadd.f32 %v1090, %v1266
    %v1268 = vpop.f32.mrb[0].mxu0
    %v1269 = vpop.f32.mrb[0].mxu0
    %v1270 = vadd.f32 %v1093, %v1269
    %v1271 = vpop.f32.mrb[0].mxu0
    %1272 = vmatprep.mubr.bf16.mxu0 %v622
    %1273 = vmatmul.mubr.bf16.gmra.mrb[0].mxu0 %v621
    %v1274 = vpop.f32.mrb[0].mxu0
    %v1275 = vadd.f32 %v1098, %v1274
    %v1276 = vpop.f32.mrb[0].mxu0
    %v1277 = vpop.f32.mrb[0].mxu0
    %v1278 = vadd.f32 %v1101, %v1277
    %v1279 = vpop.f32.mrb[0].mxu0
    %1280 = vmatprep.mubr.bf16.mxu0 %v624
    %1281 = vmatmul.mubr.bf16.gmra.mrb[0].mxu0 %v623
    %v1282 = vpop.f32.mrb[0].mxu0
    %v1283 = vadd.f32 %v1106, %v1282
    %v1284 = vpop.f32.mrb[0].mxu0
    %v1285 = vpop.f32.mrb[0].mxu0
    %v1286 = vadd.f32 %v1109, %v1285
    %v1287 = vpop.f32.mrb[0].mxu0
    %1288 = vmatprep.mubr.bf16.mxu0 %v626
    %1289 = vmatmul.mubr.bf16.gmra.mrb[0].mxu0 %v625
    %v1290 = vpop.f32.mrb[0].mxu0
    %v1291 = vadd.f32 %v1114, %v1290
    %v1292 = vpop.f32.mrb[0].mxu0
    %v1293 = vpop.f32.mrb[0].mxu0
    %v1294 = vadd.f32 %v1117, %v1293
    %v1295 = vpop.f32.mrb[0].mxu0
    %1296 = vmatprep.mubr.bf16.mxu0 %v628
    %1297 = vmatmul.mubr.bf16.gmra.mrb[0].mxu0 %v627
    %v1298 = vpop.f32.mrb[0].mxu0
    %v1299 = vadd.f32 %v1122, %v1298
    %v1300 = vpop.f32.mrb[0].mxu0
    %v1301 = vpop.f32.mrb[0].mxu0
    %v1302 = vadd.f32 %v1125, %v1301
    %v1303 = vpop.f32.mrb[0].mxu0
    %1304 = vmatprep.mubr.bf16.mxu0 %v630
    %1305 = vmatmul.mubr.bf16.gmra.mrb[0].mxu0 %v629
    %v1306 = vpop.f32.mrb[0].mxu0
    %v1307 = vadd.f32 %v1130, %v1306
    %v1308 = vpop.f32.mrb[0].mxu0
    %v1309 = vpop.f32.mrb[0].mxu0
    %v1310 = vadd.f32 %v1133, %v1309
    %v1311 = vpop.f32.mrb[0].mxu0
    %1312 = vdwg.mxu0
    %v1313 = vld [vmem:[%s5] sm:$0x1]
    %v1315 = vlaneseq
    %v1316 = vshrl.u32 %v1315, 7
    %v1317 = vsub.s32 0, %v1316
    %v1318 = vrot.slane %v1313, %v1317
    %v1320 = vadd.f32 %v1187, %v1318
    %v1321 = vadd.f32 %v1190, %v1318
    %v1322 = vadd.f32 %v1195, %v1318
    %v1323 = vadd.f32 %v1198, %v1318
    %v1324 = vadd.f32 %v1203, %v1318
    %v1325 = vadd.f32 %v1206, %v1318
    %v1326 = vadd.f32 %v1211, %v1318
    %v1327 = vadd.f32 %v1214, %v1318
    %v1328 = vadd.f32 %v1219, %v1318
    %v1329 = vadd.f32 %v1222, %v1318
    %v1330 = vadd.f32 %v1227, %v1318
    %v1331 = vadd.f32 %v1230, %v1318
    %v1332 = vadd.f32 %v1235, %v1318
    %v1333 = vadd.f32 %v1238, %v1318
    %v1334 = vadd.f32 %v1243, %v1318
    %v1335 = vadd.f32 %v1246, %v1318
    %v1336 = vadd.f32 %v1251, %v1318
    %v1337 = vadd.f32 %v1254, %v1318
    %v1338 = vadd.f32 %v1259, %v1318
    %v1339 = vadd.f32 %v1262, %v1318
    %v1340 = vadd.f32 %v1267, %v1318
    %v1341 = vadd.f32 %v1270, %v1318
    %v1342 = vadd.f32 %v1275, %v1318
    %v1343 = vadd.f32 %v1278, %v1318
    %v1344 = vadd.f32 %v1283, %v1318
    %v1345 = vadd.f32 %v1286, %v1318
    %v1346 = vadd.f32 %v1291, %v1318
    %v1347 = vadd.f32 %v1294, %v1318
    %v1348 = vadd.f32 %v1299, %v1318
    %v1349 = vadd.f32 %v1302, %v1318
    %v1350 = vadd.f32 %v1307, %v1318
    %v1351 = vadd.f32 %v1310, %v1318
    %v1352 = vmax.f32 %v1320, 0.0
    %v1353 = vmax.f32 %v1321, 0.0
    %v1354 = vmax.f32 %v1322, 0.0
    %v1355 = vmax.f32 %v1323, 0.0
    %v1356 = vmax.f32 %v1324, 0.0
    %v1357 = vmax.f32 %v1325, 0.0
    %v1358 = vmax.f32 %v1326, 0.0
    %v1359 = vmax.f32 %v1327, 0.0
    %v1360 = vmax.f32 %v1328, 0.0
    %v1361 = vmax.f32 %v1329, 0.0
    %v1362 = vmax.f32 %v1330, 0.0
    %v1363 = vmax.f32 %v1331, 0.0
    %v1364 = vmax.f32 %v1332, 0.0
    %v1365 = vmax.f32 %v1333, 0.0
    %v1366 = vmax.f32 %v1334, 0.0
    %v1367 = vmax.f32 %v1335, 0.0
    %v1368 = vmax.f32 %v1336, 0.0
    %v1369 = vmax.f32 %v1337, 0.0
    %v1370 = vmax.f32 %v1338, 0.0
    %v1371 = vmax.f32 %v1339, 0.0
    %v1372 = vmax.f32 %v1340, 0.0
    %v1373 = vmax.f32 %v1341, 0.0
    %v1374 = vmax.f32 %v1342, 0.0
    %v1375 = vmax.f32 %v1343, 0.0
    %v1376 = vmax.f32 %v1344, 0.0
    %v1377 = vmax.f32 %v1345, 0.0
    %v1378 = vmax.f32 %v1346, 0.0
    %v1379 = vmax.f32 %v1347, 0.0
    %v1380 = vmax.f32 %v1348, 0.0
    %v1381 = vmax.f32 %v1349, 0.0
    %v1382 = vmax.f32 %v1350, 0.0
    %v1383 = vmax.f32 %v1351, 0.0
    %v1384 = vpack.c.bf16 %v1353, %v1352
    %v1385 = vpack.c.bf16 %v1355, %v1354
    %v1386 = vpack.c.bf16 %v1357, %v1356
    %v1387 = vpack.c.bf16 %v1359, %v1358
    %v1388 = vpack.c.bf16 %v1361, %v1360
    %v1389 = vpack.c.bf16 %v1363, %v1362
    %v1390 = vpack.c.bf16 %v1365, %v1364
    %v1391 = vpack.c.bf16 %v1367, %v1366
    %v1392 = vpack.c.bf16 %v1369, %v1368
    %v1393 = vpack.c.bf16 %v1371, %v1370
    %v1394 = vpack.c.bf16 %v1373, %v1372
    %v1395 = vpack.c.bf16 %v1375, %v1374
    %v1396 = vpack.c.bf16 %v1377, %v1376
    %v1397 = vpack.c.bf16 %v1379, %v1378
    %v1398 = vpack.c.bf16 %v1381, %v1380
    %v1399 = vpack.c.bf16 %v1383, %v1382
    %v1400 = vld [vmem:[%s6] sm:$0xff]
    %v1401 = vld [vmem:[%s6 + $0x8] sm:$0xff]
    %v1404 = vunpack.c.l.b16 %v1400
    %v1405 = vunpack.c.h.b16 %v1400
    %v1406 = vunpack.c.l.b16 %v1401
    %v1407 = vunpack.c.h.b16 %v1401
    %v1408 = vpack.c.b16 %v1406, %v1404
    %v1409 = vpack.c.b16 %v1407, %v1405
    %1412 = vmatprep.subr.bf16.mxu0 0
    %1413 = vmatpush1.bf16.msra.mxu0 %v1384
    %1414 = vmatprep.subr.bf16.mxu0 0
    %1415 = vmatpush1.bf16.msra.mxu0 %v1385
    %1416 = vmatprep.subr.bf16.mxu0 0
    %1417 = vmatpush1.bf16.msra.mxu0 %v1386
    %1418 = vmatprep.subr.bf16.mxu0 0
    %1419 = vmatpush1.bf16.msra.mxu0 %v1387
    %1420 = vmatprep.subr.bf16.mxu0 0
    %1421 = vmatpush1.bf16.msra.mxu0 %v1388
    %1422 = vmatprep.subr.bf16.mxu0 0
    %1423 = vmatpush1.bf16.msra.mxu0 %v1389
    %1424 = vmatprep.subr.bf16.mxu0 0
    %1425 = vmatpush1.bf16.msra.mxu0 %v1390
    %1426 = vmatprep.subr.bf16.mxu0 0
    %1427 = vmatpush1.bf16.msra.mxu0 %v1391
    %1428 = vmatprep.subr.bf16.mxu0 0
    %1429 = vmatpush1.bf16.msra.mxu0 %v1392
    %1430 = vmatprep.subr.bf16.mxu0 0
    %1431 = vmatpush1.bf16.msra.mxu0 %v1393
    %1432 = vmatprep.subr.bf16.mxu0 0
    %1433 = vmatpush1.bf16.msra.mxu0 %v1394
    %1434 = vmatprep.subr.bf16.mxu0 0
    %1435 = vmatpush1.bf16.msra.mxu0 %v1395
    %1436 = vmatprep.subr.bf16.mxu0 0
    %1437 = vmatpush1.bf16.msra.mxu0 %v1396
    %1438 = vmatprep.subr.bf16.mxu0 0
    %1439 = vmatpush1.bf16.msra.mxu0 %v1397
    %1440 = vmatprep.subr.bf16.mxu0 0
    %1441 = vmatpush1.bf16.msra.mxu0 %v1398
    %1442 = vmatprep.subr.bf16.mxu0 0
    %1443 = vmatpush1.bf16.msra.mxu0 %v1399
    %1444 = vmatprep.mubr.bf16.mxu0 %v1409
    %1445 = vmatmul.mubr.bf16.gmra.mrb[0].mxu0 %v1408
    %v1446 = vpop.f32.mrb[0].mxu0
    %v1447 = vadd.f32 0.0, %v1446
    %v1448 = vpop.f32.mrb[0].mxu0
    %v1449 = vpop.f32.mrb[0].mxu0
    %v1450 = vadd.f32 0.0, %v1449
    %v1451 = vpop.f32.mrb[0].mxu0
    %1452 = vdwg.mxu0
    %v1453 = vpack.c.bf16 %v1450, %v1447
    %v1454 = vld [vmem:[#allocation10] sm:$0xf]
    %v1455 = vld [vmem:[#allocation10 + $0x4] sm:$0xf]
    %v1456 = vld [vmem:[#allocation10 + $0x8] sm:$0xf]
    %v1457 = vld [vmem:[#allocation10 + $0xc] sm:$0xf]
    %v1458 = vld [vmem:[#allocation10 + $0x10] sm:$0xf]
    %v1459 = vld [vmem:[#allocation10 + $0x14] sm:$0xf]
    %v1460 = vld [vmem:[#allocation10 + $0x18] sm:$0xf]
    %v1461 = vld [vmem:[#allocation10 + $0x1c] sm:$0xf]
    %v1462 = vld [vmem:[#allocation10 + $0x20] sm:$0xf]
    %v1463 = vld [vmem:[#allocation10 + $0x24] sm:$0xf]
    %v1464 = vld [vmem:[#allocation10 + $0x28] sm:$0xf]
    %v1465 = vld [vmem:[#allocation10 + $0x2c] sm:$0xf]
    %v1466 = vld [vmem:[#allocation10 + $0x30] sm:$0xf]
    %v1467 = vld [vmem:[#allocation10 + $0x34] sm:$0xf]
    %v1468 = vld [vmem:[#allocation10 + $0x38] sm:$0xf]
    %v1469 = vld [vmem:[#allocation10 + $0x3c] sm:$0xf]
    %v1470 = vld [vmem:[%s8] sm:$0x1]
    %v1472 = vlaneseq
    %v1473 = vshrl.u32 %v1472, 7
    %v1474 = vsub.s32 0, %v1473
    %v1475 = vrot.slane %v1470, %v1474
    %v1493 = vunpack.c.l.b16 %v1454
    %v1494 = vunpack.c.l.b16 %v1455
    %v1495 = vunpack.c.l.b16 %v1456
    %v1496 = vunpack.c.l.b16 %v1457
    %v1497 = vunpack.c.l.b16 %v1458
    %v1498 = vunpack.c.l.b16 %v1459
    %v1499 = vunpack.c.l.b16 %v1460
    %v1500 = vunpack.c.l.b16 %v1461
    %v1501 = vunpack.c.l.b16 %v1462
    %v1502 = vunpack.c.l.b16 %v1463
    %v1503 = vunpack.c.l.b16 %v1464
    %v1504 = vunpack.c.l.b16 %v1465
    %v1505 = vunpack.c.l.b16 %v1466
    %v1506 = vunpack.c.l.b16 %v1467
    %v1507 = vunpack.c.l.b16 %v1468
    %v1508 = vunpack.c.l.b16 %v1469
    %v1509 = vpack.c.b16 %v1494, %v1493
    %v1510 = vpack.c.b16 %v1496, %v1495
    %v1511 = vpack.c.b16 %v1498, %v1497
    %v1512 = vpack.c.b16 %v1500, %v1499
    %v1513 = vpack.c.b16 %v1502, %v1501
    %v1514 = vpack.c.b16 %v1504, %v1503
    %v1515 = vpack.c.b16 %v1506, %v1505
    %v1516 = vpack.c.b16 %v1508, %v1507
    %1525 = vmatprep.subr.bf16.mxu0 0
    %1526 = vmatpush1.bf16.msra.mxu0 %v1509
    %1527 = vmatprep.subr.bf16.mxu0 0
    %1528 = vmatpush1.bf16.msra.mxu0 %v1510
    %1529 = vmatprep.subr.bf16.mxu0 0
    %1530 = vmatpush1.bf16.msra.mxu0 %v1511
    %1531 = vmatprep.subr.bf16.mxu0 0
    %1532 = vmatpush1.bf16.msra.mxu0 %v1512
    %1533 = vmatprep.subr.bf16.mxu0 0
    %1534 = vmatpush1.bf16.msra.mxu0 %v1513
    %1535 = vmatprep.subr.bf16.mxu0 0
    %1536 = vmatpush1.bf16.msra.mxu0 %v1514
    %1537 = vmatprep.subr.bf16.mxu0 0
    %1538 = vmatpush1.bf16.msra.mxu0 %v1515
    %1539 = vmatprep.subr.bf16.mxu0 0
    %1540 = vmatpush1.bf16.msra.mxu0 %v1516
    %1541 = vmatprep.subr.bf16.mxu0 0
    %1542 = vmatpush1.bf16.msra.mxu0 0
    %1543 = vmatprep.subr.bf16.mxu0 0
    %1544 = vmatpush1.bf16.msra.mxu0 0
    %1545 = vmatprep.subr.bf16.mxu0 0
    %1546 = vmatpush1.bf16.msra.mxu0 0
    %1547 = vmatprep.subr.bf16.mxu0 0
    %1548 = vmatpush1.bf16.msra.mxu0 0
    %1549 = vmatprep.subr.bf16.mxu0 0
    %1550 = vmatpush1.bf16.msra.mxu0 0
    %1551 = vmatprep.subr.bf16.mxu0 0
    %1552 = vmatpush1.bf16.msra.mxu0 0
    %1553 = vmatprep.subr.bf16.mxu0 0
    %1554 = vmatpush1.bf16.msra.mxu0 0
    %1555 = vmatprep.subr.bf16.mxu0 0
    %1556 = vmatpush1.bf16.msra.mxu0 0
    %1557 = vmatprep.mubr.bf16.mxu0 0
    %1558 = vmatmul.mubr.bf16.gmra.mrb[0].mxu0 %v1453
    %v1559 = vpop.f32.mrb[0].mxu0
    %v1560 = vadd.f32 %v1475, %v1559
    %v1561 = vpop.f32.mrb[0].mxu0
    %v1562 = vpop.f32.mrb[0].mxu0
    %v1563 = vadd.f32 %v1475, %v1562
    %v1564 = vpop.f32.mrb[0].mxu0
    %1565 = vdwg.mxu0
    %1566 = vst [vmem:[#allocation11] sm:$0xff] %v1560
    %1567 = vst [vmem:[#allocation11 + $0x8] sm:$0xff] %v1563
    // Predicated region
    $region58: #{tpu_custom_call.1} parent=1 // pred_check
      _
    $region59: #{tpu_custom_call.1} parent=1 // pred_check_branch
      %1569 = sbr.rel (0) target = $region61
    $region60: #{tpu_custom_call.1} parent=1 // pred_region
      %s1571 = ssub.s32 256, 256
      %1572 = vsyncadd [#allocation4], %s1571
      %s1573 = sshll.u32 [#allocation11], 4
      %s1574 = int_to_ptr.vmem [resolvable:$true] %s1573
      %1579 = dma.vmem_to_hbm [thread:$0]  %s1574, 256, %s9, [#allocation4], 128, 128, 8
    $region61: #{tpu_custom_call.1} parent=1 // pred_fallthru
      _
    // Predicated region
    $region62: #{tpu_custom_call.1} parent=1 // pred_check
      _
    $region63: #{tpu_custom_call.1} parent=1 // pred_check_branch
      %1581 = sbr.rel (0) target = $region65
    $region64: #{tpu_custom_call.1} parent=1 // pred_region
      %1582 = dma.done [#allocation4], 256
    $region65: #{tpu_custom_call.1} parent=1 // pred_fallthru
      _
    %1583 = vsyncpa [#allocation3], 1
    %1584 = vsyncpa [#allocation6], 1
    %1585 = vsyncpa [#allocation9], 1
    %1586 = vsyncpa [#allocation4], 1

</llo_original>
